<compile_context>
chip_gen: v7x
topology: tpu7x:2x2x1
jax: 0.10.0
libtpu: 0.0.40
codegen_flags: <defaults>
</compile_context>

<pallas_src>
import functools
import math

import jax
import jax.numpy as jnp
from jax.experimental import pallas as pl
from jax.experimental.pallas import tpu as pltpu

F32 = jnp.float32
BF16 = jnp.bfloat16


def _layer_norm(x, g, b, eps=1e-5):
    mu = jnp.mean(x, axis=-1, keepdims=True)
    var = jnp.mean((x - mu) ** 2, axis=-1, keepdims=True)
    return (x - mu) * jax.lax.rsqrt(var + eps) * g + b


# ---------------------------------------------------------------------------
# Single fused kernel: conv squasher + linear embedding + transformer layers.
# One grid step == `batch_block` batch elements (statically unrolled).
# ---------------------------------------------------------------------------
def _encoder_kernel(xm_ref,                       # (Bb, T/2+2, 2*in_dim) bf16  (even|odd merged, replicate-padded)
                    w0m_ref, v0_ref,              # conv0 merged taps / [b0,s0,t0,bl]
                    wc_ref, vc_ref,               # inner conv taps / [b,s,t]
                    wl_ref,                       # linear embedding
                    wqkv_ref, wo_ref, wf1_ref, wf2_ref,
                    bqkv_ref, bf1_ref, vl6_ref,   # [bo,g1,be1,bf2,g2,be2]
                    o_ref,                        # (Bb, Tq, C) f32
                    pad_ref, pool_ref,            # VMEM scratch
                    *, seq_len, quant_factor, num_heads, num_layers,
                    neg_slope, batch_block):
    C = o_ref.shape[-1]
    hd = C // num_heads

    for b in range(batch_block):
        L = seq_len // 2
        xm = xm_ref[b]                                        # (L+2, 2*in_dim) bf16

        # --- squasher[0]: stride-2 replicate-pad conv as 3 shifted matmuls over the
        #     even/odd-merged input (tap pairs concatenated along K). ---
        h = jnp.dot(xm[0:L], w0m_ref[0], preferred_element_type=F32)
        h += jnp.dot(xm[1:L + 1], w0m_ref[1], preferred_element_type=F32)
        h += jnp.dot(xm[2:L + 2], w0m_ref[2], preferred_element_type=F32)
        h += v0_ref[0:1, :]
        h = jnp.where(h >= 0.0, h, neg_slope * h)             # LeakyReLU(0.2)
        h = h * v0_ref[1:2, :] + v0_ref[2:3, :]               # folded eval BatchNorm

        # --- squasher[1..qf-1]: Conv1d(stride=1) + LeakyReLU + BN + MaxPool1d(2) ---
        for i in range(quant_factor - 1):
            # replicate pad written once into VMEM scratch; taps are shifted slices.
            pad_ref[2:2 + L, :] = h
            pad_ref[0:1, :] = h[0:1]
            pad_ref[1:2, :] = h[0:1]
            pad_ref[2 + L:3 + L, :] = h[L - 1:L]
            pad_ref[3 + L:4 + L, :] = h[L - 1:L]
            y = jnp.dot(pad_ref[0:L, :].astype(BF16), wc_ref[i, 0],
                        preferred_element_type=F32)
            for k in range(1, 5):
                y += jnp.dot(pad_ref[k:k + L, :].astype(BF16), wc_ref[i, k],
                             preferred_element_type=F32)
            y += vc_ref[i, 0:1, :]
            y = jnp.where(y >= 0.0, y, neg_slope * y)
            y = y * vc_ref[i, 1:2, :] + vc_ref[i, 2:3, :]
            # MaxPool1d(2): one vectorized max of even/odd rows via strided VMEM reads.
            Lh = L // 2
            pool_ref[0:L, :] = y
            h = jnp.maximum(pool_ref[pl.ds(0, Lh, stride=2), :],
                            pool_ref[pl.ds(1, Lh, stride=2), :])
            L = Lh

        # --- LinearEmbedding ---
        h = jnp.dot(h.astype(BF16), wl_ref[...],
                    preferred_element_type=F32) + v0_ref[3:4, :]

        # --- TransformerEncoder layers (post-norm, gelu, eval: no dropout, no mask) ---
        for l in range(num_layers):
            x = h                                              # (L, C) f32
            # fused Q|K|V projection (softmax scale pre-folded into Q on host)
            qkv = jnp.dot(x.astype(BF16), wqkv_ref[l],
                          preferred_element_type=F32) + bqkv_ref[l]
            ctx_heads = []
            for hh in range(num_heads):
                qh = qkv[:, hh * hd:(hh + 1) * hd].astype(BF16)
                kh = qkv[:, C + hh * hd:C + (hh + 1) * hd].astype(BF16)
                vh = qkv[:, 2 * C + hh * hd:2 * C + (hh + 1) * hd].astype(BF16)
                s = jax.lax.dot_general(qh, kh, (((1,), (1,)), ((), ())),
                                        preferred_element_type=F32)
                s = s - jnp.max(s, axis=-1, keepdims=True)
                p = jnp.exp(s)
                p = p * pl.reciprocal(jnp.sum(p, axis=-1, keepdims=True), approx=True)
                ctx_heads.append(jnp.dot(p.astype(BF16), vh,
                                         preferred_element_type=F32))
            ctx = ctx_heads[0] if num_heads == 1 else jnp.concatenate(ctx_heads, axis=-1)
            attn = jnp.dot(ctx.astype(BF16), wo_ref[l],
                           preferred_element_type=F32) + vl6_ref[l, 0:1, :]
            h1 = _layer_norm(x + attn, vl6_ref[l, 1:2, :], vl6_ref[l, 2:3, :])
            f = jnp.dot(h1.astype(BF16), wf1_ref[l],
                        preferred_element_type=F32) + bf1_ref[l]
            # TODO(synk): PyTorch F.gelu default is exact (erf-based); tanh-approx GELU
            # used for robust Mosaic lowering.
            f = jax.nn.gelu(f, approximate=True)
            f = jnp.dot(f.astype(BF16), wf2_ref[l],
                        preferred_element_type=F32) + vl6_ref[l, 3:4, :]
            h = _layer_norm(h1 + f, vl6_ref[l, 4:5, :], vl6_ref[l, 5:6, :])

        o_ref[b] = h


def transformer_encoder_forward(x, kp, *, num_heads, quant_factor, num_layers,
                                neg_slope=0.2, batch_block=None):
    """x: (B, T, in_dim) -> (B, T / 2**quant_factor, hidden)."""
    B, T, in_dim = x.shape
    C = kp['wl'].shape[0]
    assert T % (1 << quant_factor) == 0
    Tq = T >> quant_factor

    if batch_block is None:
        # 2 grid steps when B is even so ("parallel",) shards across both v7x
        # TensorCores; on 1-TC chips (v5e/v6e) pass batch_block=B for 1 step.
        batch_block = B // 2 if (B % 2 == 0 and B >= 2) else B
    assert B % batch_block == 0
    n_steps = B // batch_block

    # Replicate pad (pad=2, 'replicate') + even/odd de-interleave + lane-merge so the
    # stride-2 conv becomes 3 contiguous shifted-slice matmuls inside the kernel.
    xp = jnp.concatenate([x[:, :1], x[:, :1], x, x[:, -1:], x[:, -1:]], axis=1)
    xm = jnp.concatenate([xp[:, 0::2, :], xp[:, 1::2, :]], axis=-1).astype(BF16)
    Le = xm.shape[1]                                            # T//2 + 2

    weight_keys = ('w0m', 'v0', 'wc', 'vc', 'wl', 'wqkv', 'wo',
                   'wf1', 'wf2', 'bqkv', 'bf1', 'vl6')
    weights = [kp[k] for k in weight_keys]
    w_specs = [pl.BlockSpec(w.shape, lambda i, _n=w.ndim: (0,) * _n) for w in weights]

    kern = functools.partial(
        _encoder_kernel, seq_len=T, quant_factor=quant_factor,
        num_heads=num_heads, num_layers=num_layers, neg_slope=neg_slope,
        batch_block=batch_block)

    return pl.pallas_call(
        kern,
        out_shape=jax.ShapeDtypeStruct((B, Tq, C), F32),
        grid=(n_steps,),
        in_specs=[pl.BlockSpec((batch_block, Le, 2 * in_dim),
                               lambda i: (i, 0, 0))] + w_specs,
        out_specs=pl.BlockSpec((batch_block, Tq, C), lambda i: (i, 0, 0)),
        scratch_shapes=[pltpu.VMEM((T // 2 + 4, C), F32),   # replicate-pad buffer
                        pltpu.VMEM((T // 2, C), F32)],       # maxpool staging buffer
        compiler_params=pltpu.CompilerParams(
            dimension_semantics=("parallel",)),
    )(xm, *weights)


# ---------------------------------------------------------------------------
# Deterministic parameter construction (PyTorch layouts) + kernel-layout prep.
# ---------------------------------------------------------------------------
class ParamGen:
    def __init__(self, seed):
        self._key = jax.random.PRNGKey(seed)

    def normal(self, shape, scale=0.1):
        self._key, k = jax.random.split(self._key)
        return (scale * jax.random.normal(k, shape)).astype(F32)


def init_torch_params(cfg, seed=1):
    pg = ParamGen(seed)
    in_dim, C = cfg['in_dim'], cfg['hidden_size']
    FF, qf, nl = cfg['intermediate_size'], cfg['quant_factor'], cfg['num_hidden_layers']

    def bn(c):
        return dict(gamma=1.0 + pg.normal((c,), 0.05), beta=pg.normal((c,), 0.05),
                    rm=pg.normal((c,), 0.05), rv=1.0 + jnp.abs(pg.normal((c,), 0.05)))

    def tf_layer():
        return dict(in_proj_w=pg.normal((3 * C, C)), in_proj_b=pg.normal((3 * C,)),
                    out_proj_w=pg.normal((C, C)), out_proj_b=pg.normal((C,)),
                    ln1_g=1.0 + pg.normal((C,), 0.05), ln1_b=pg.normal((C,), 0.05),
                    lin1_w=pg.normal((FF, C)), lin1_b=pg.normal((FF,)),
                    lin2_w=pg.normal((C, FF)), lin2_b=pg.normal((C,)),
                    ln2_g=1.0 + pg.normal((C,), 0.05), ln2_b=pg.normal((C,), 0.05))

    return dict(
        conv0=dict(w=pg.normal((C, in_dim, 5)), b=pg.normal((C,)), bn=bn(C)),
        convs=[dict(w=pg.normal((C, C, 5)), b=pg.normal((C,)), bn=bn(C))
               for _ in range(1, qf)],
        lin=dict(w=pg.normal((C, C)), b=pg.normal((C,))),
        layers=[tf_layer() for _ in range(nl)],
    )


def prepare_kernel_params(tp, cfg):
    """One-time host-side layout transform: torch layouts -> kernel layouts."""
    C, H = cfg['hidden_size'], cfg['num_attention_heads']
    hd = C // H

    def bn_fold(bn):  # eval BatchNorm -> per-channel scale/shift
        scale = bn['gamma'] * jax.lax.rsqrt(bn['rv'] + 1e-5)
        shift = bn['beta'] - bn['rm'] * scale
        return scale, shift

    # conv0: (C, in_dim, 5) torch -> per-tap (in_dim, C); merge even/odd tap pairs.
    w0 = tp['conv0']['w']
    taps = [w0[:, :, k].T for k in range(5)]
    w0m = jnp.stack([
        jnp.concatenate([taps[0], taps[1]], axis=0),
        jnp.concatenate([taps[2], taps[3]], axis=0),
        jnp.concatenate([taps[4], jnp.zeros_like(taps[4])], axis=0),
    ]).astype(BF16)                                            # (3, 2*in_dim, C)
    s0, t0 = bn_fold(tp['conv0']['bn'])
    v0 = jnp.stack([tp['conv0']['b'], s0, t0, tp['lin']['b']], axis=0)   # (4, C)

    wc, vc = [], []
    for layer in tp['convs']:
        wc.append(jnp.transpose(layer['w'], (2, 1, 0)))        # (5, C, C)
        s, t = bn_fold(layer['bn'])
        vc.append(jnp.stack([layer['b'], s, t], axis=0))       # (3, C)
    if wc:
        wc = jnp.stack(wc).astype(BF16)
        vc = jnp.stack(vc)
    else:  # quant_factor == 1: unused dummies (kernel loop has 0 iterations)
        wc = jnp.zeros((1, 5, C, C), BF16)
        vc = jnp.zeros((1, 3, C), F32)

    wl = tp['lin']['w'].T.astype(BF16)

    scale = 1.0 / math.sqrt(hd)
    acc = {k: [] for k in ('wqkv', 'wo', 'wf1', 'wf2', 'bqkv', 'bf1', 'vl6')}
    for lyr in tp['layers']:
        wq = lyr['in_proj_w'][:C].T * scale        # fold softmax scale into Q
        wk = lyr['in_proj_w'][C:2 * C].T
        wv = lyr['in_proj_w'][2 * C:].T
        bq = lyr['in_proj_b'][:C] * scale
        bk = lyr['in_proj_b'][C:2 * C]
        bv = lyr['in_proj_b'][2 * C:]
        acc['wqkv'].append(jnp.concatenate([wq, wk, wv], axis=1))        # (C, 3C)
        acc['bqkv'].append(jnp.concatenate([bq, bk, bv]).reshape(1, 3 * C))
        acc['wo'].append(lyr['out_proj_w'].T)                            # (C, C)
        acc['wf1'].append(lyr['lin1_w'].T)                               # (C, FF)
        acc['bf1'].append(lyr['lin1_b'].reshape(1, -1))
        acc['wf2'].append(lyr['lin2_w'].T)                               # (FF, C)
        acc['vl6'].append(jnp.stack([lyr['out_proj_b'], lyr['ln1_g'], lyr['ln1_b'],
                                     lyr['lin2_b'], lyr['ln2_g'], lyr['ln2_b']],
                                    axis=0))                             # (6, C)

    return dict(w0m=w0m, v0=v0, wc=wc, vc=vc, wl=wl,
                wqkv=jnp.stack(acc['wqkv']).astype(BF16),
                wo=jnp.stack(acc['wo']).astype(BF16),
                wf1=jnp.stack(acc['wf1']).astype(BF16),
                wf2=jnp.stack(acc['wf2']).astype(BF16),
                bqkv=jnp.stack(acc['bqkv']),
                bf1=jnp.stack(acc['bf1']),
                vl6=jnp.stack(acc['vl6']))


CONFIG = {
    'in_dim': 16, 'hidden_size': 32, 'num_attention_heads': 2,
    'intermediate_size': 64, 'num_hidden_layers': 1, 'quant_factor': 2,
    'sequence_length': 16, 'quant_sequence_length': 4, 'max_len': 32,
    'pos_encoding': 'none', 'temporal_bias': 'none',
}


if __name__ == "__main__":
    cfg = CONFIG
    B, T = 2, cfg['sequence_length']
    x = jax.random.normal(jax.random.PRNGKey(0), (B, T, cfg['in_dim']), F32)

    torch_params = init_torch_params(cfg, seed=1)
    kparams = prepare_kernel_params(torch_params, cfg)

    fwd = jax.jit(functools.partial(
        transformer_encoder_forward,
        num_heads=cfg['num_attention_heads'],
        quant_factor=cfg['quant_factor'],
        num_layers=cfg['num_hidden_layers']))

    out = fwd(x, kparams)
    jax.block_until_ready(out)

    assert out.shape == (B, T >> cfg['quant_factor'], cfg['hidden_size'])
    assert bool(jnp.all(jnp.isfinite(out)))
    print("KERNEL_OK")
</pallas_src>

<mosaic_0001>
module attributes {stable_mosaic.version = 11 : i64} {
  func.func @_encoder_kernel(%arg0: i32, %arg1: memref<1x10x32xbf16, #tpu.memory_space<vmem>>, %arg2: memref<3x32x32xbf16, #tpu.memory_space<vmem>>, %arg3: memref<4x32xf32, #tpu.memory_space<vmem>>, %arg4: memref<1x5x32x32xbf16, #tpu.memory_space<vmem>>, %arg5: memref<1x3x32xf32, #tpu.memory_space<vmem>>, %arg6: memref<32x32xbf16, #tpu.memory_space<vmem>>, %arg7: memref<1x32x96xbf16, #tpu.memory_space<vmem>>, %arg8: memref<1x32x32xbf16, #tpu.memory_space<vmem>>, %arg9: memref<1x32x64xbf16, #tpu.memory_space<vmem>>, %arg10: memref<1x64x32xbf16, #tpu.memory_space<vmem>>, %arg11: memref<1x1x96xf32, #tpu.memory_space<vmem>>, %arg12: memref<1x1x64xf32, #tpu.memory_space<vmem>>, %arg13: memref<1x6x32xf32, #tpu.memory_space<vmem>>, %arg14: memref<1x4x32xf32, #tpu.memory_space<vmem>>, %arg15: memref<12x32xf32, #tpu.memory_space<vmem>>, %arg16: memref<8x32xf32, #tpu.memory_space<vmem>>) attributes {dimension_semantics = [#tpu.dimension_semantics<parallel>], iteration_bounds = array<i64: 2>, scalar_prefetch = 0 : i64, scratch_operands = 2 : i64, tpu.core_type = #tpu.core_type<tc>, window_params = [{transform_indices = @transform_0, window_bounds = array<i64: 1, 10, 32>}, {pipeline_mode = #tpu.pipeline_mode<synchronous>, transform_indices = @transform_1, window_bounds = array<i64: 3, 32, 32>}, {pipeline_mode = #tpu.pipeline_mode<synchronous>, transform_indices = @transform_2, window_bounds = array<i64: 4, 32>}, {pipeline_mode = #tpu.pipeline_mode<synchronous>, transform_indices = @transform_3, window_bounds = array<i64: 1, 5, 32, 32>}, {pipeline_mode = #tpu.pipeline_mode<synchronous>, transform_indices = @transform_4, window_bounds = array<i64: 1, 3, 32>}, {pipeline_mode = #tpu.pipeline_mode<synchronous>, transform_indices = @transform_5, window_bounds = array<i64: 32, 32>}, {pipeline_mode = #tpu.pipeline_mode<synchronous>, transform_indices = @transform_6, window_bounds = array<i64: 1, 32, 96>}, {pipeline_mode = #tpu.pipeline_mode<synchronous>, transform_indices = @transform_7, window_bounds = array<i64: 1, 32, 32>}, {pipeline_mode = #tpu.pipeline_mode<synchronous>, transform_indices = @transform_8, window_bounds = array<i64: 1, 32, 64>}, {pipeline_mode = #tpu.pipeline_mode<synchronous>, transform_indices = @transform_9, window_bounds = array<i64: 1, 64, 32>}, {pipeline_mode = #tpu.pipeline_mode<synchronous>, transform_indices = @transform_10, window_bounds = array<i64: 1, 1, 96>}, {pipeline_mode = #tpu.pipeline_mode<synchronous>, transform_indices = @transform_11, window_bounds = array<i64: 1, 1, 64>}, {pipeline_mode = #tpu.pipeline_mode<synchronous>, transform_indices = @transform_12, window_bounds = array<i64: 1, 6, 32>}, {transform_indices = @transform_13, window_bounds = array<i64: 1, 4, 32>}]} {
    %c0 = arith.constant 0 : index
    %c0_0 = arith.constant 0 : index
    %c0_1 = arith.constant 0 : index
    %0 = vector.load %arg1[%c0, %c0_0, %c0_1] : memref<1x10x32xbf16, #tpu.memory_space<vmem>>, vector<1x10x32xbf16>
    %1 = vector.shape_cast %0 : vector<1x10x32xbf16> to vector<10x32xbf16>
    %2 = vector.extract_strided_slice %1 {offsets = [0, 0], sizes = [8, 32], strides = [1, 1]} : vector<10x32xbf16> to vector<8x32xbf16>
    %c0_2 = arith.constant 0 : index
    %c0_3 = arith.constant 0 : index
    %c0_4 = arith.constant 0 : index
    %3 = vector.load %arg2[%c0_2, %c0_3, %c0_4] : memref<3x32x32xbf16, #tpu.memory_space<vmem>>, vector<1x32x32xbf16>
    %4 = vector.shape_cast %3 : vector<1x32x32xbf16> to vector<32x32xbf16>
    %cst = arith.constant dense<0.000000e+00> : vector<8x32xf32>
    %5 = tpu.matmul %2, %4, %cst {dimension_numbers = #tpu.dot_dimension_numbers<[1], [0], [0], [1], [0, 0, 1, 1], [], []>} : vector<8x32xbf16>, vector<32x32xbf16>, vector<8x32xf32> -> vector<8x32xf32>
    %6 = vector.extract_strided_slice %1 {offsets = [1, 0], sizes = [8, 32], strides = [1, 1]} : vector<10x32xbf16> to vector<8x32xbf16>
    %c1 = arith.constant 1 : index
    %c0_5 = arith.constant 0 : index
    %c0_6 = arith.constant 0 : index
    %7 = vector.load %arg2[%c1, %c0_5, %c0_6] : memref<3x32x32xbf16, #tpu.memory_space<vmem>>, vector<1x32x32xbf16>
    %8 = vector.shape_cast %7 : vector<1x32x32xbf16> to vector<32x32xbf16>
    %cst_7 = arith.constant dense<0.000000e+00> : vector<8x32xf32>
    %9 = tpu.matmul %6, %8, %cst_7 {dimension_numbers = #tpu.dot_dimension_numbers<[1], [0], [0], [1], [0, 0, 1, 1], [], []>} : vector<8x32xbf16>, vector<32x32xbf16>, vector<8x32xf32> -> vector<8x32xf32>
    %10 = arith.addf %5, %9 : vector<8x32xf32>
    %11 = vector.extract_strided_slice %1 {offsets = [2, 0], sizes = [8, 32], strides = [1, 1]} : vector<10x32xbf16> to vector<8x32xbf16>
    %c2 = arith.constant 2 : index
    %c0_8 = arith.constant 0 : index
    %c0_9 = arith.constant 0 : index
    %12 = vector.load %arg2[%c2, %c0_8, %c0_9] : memref<3x32x32xbf16, #tpu.memory_space<vmem>>, vector<1x32x32xbf16>
    %13 = vector.shape_cast %12 : vector<1x32x32xbf16> to vector<32x32xbf16>
    %cst_10 = arith.constant dense<0.000000e+00> : vector<8x32xf32>
    %14 = tpu.matmul %11, %13, %cst_10 {dimension_numbers = #tpu.dot_dimension_numbers<[1], [0], [0], [1], [0, 0, 1, 1], [], []>} : vector<8x32xbf16>, vector<32x32xbf16>, vector<8x32xf32> -> vector<8x32xf32>
    %15 = arith.addf %10, %14 : vector<8x32xf32>
    %c0_11 = arith.constant 0 : index
    %c0_12 = arith.constant 0 : index
    %16 = vector.load %arg3[%c0_11, %c0_12] : memref<4x32xf32, #tpu.memory_space<vmem>>, vector<1x32xf32>
    %17 = vector.broadcast %16 : vector<1x32xf32> to vector<8x32xf32>
    %18 = arith.addf %15, %17 : vector<8x32xf32>
    %cst_13 = arith.constant 0.000000e+00 : f32
    %19 = vector.broadcast %cst_13 : f32 to vector<8x32xf32>
    %20 = arith.cmpf oge, %18, %19 : vector<8x32xf32>
    %cst_14 = arith.constant 2.000000e-01 : f32
    %21 = vector.broadcast %cst_14 : f32 to vector<8x32xf32>
    %22 = arith.mulf %21, %18 : vector<8x32xf32>
    %23 = arith.select %20, %18, %22 : vector<8x32xi1>, vector<8x32xf32>
    %c1_15 = arith.constant 1 : index
    %c0_16 = arith.constant 0 : index
    %24 = vector.load %arg3[%c1_15, %c0_16] : memref<4x32xf32, #tpu.memory_space<vmem>>, vector<1x32xf32>
    %25 = vector.broadcast %24 : vector<1x32xf32> to vector<8x32xf32>
    %26 = arith.mulf %23, %25 : vector<8x32xf32>
    %c2_17 = arith.constant 2 : index
    %c0_18 = arith.constant 0 : index
    %27 = vector.load %arg3[%c2_17, %c0_18] : memref<4x32xf32, #tpu.memory_space<vmem>>, vector<1x32xf32>
    %28 = vector.broadcast %27 : vector<1x32xf32> to vector<8x32xf32>
    %29 = arith.addf %26, %28 : vector<8x32xf32>
    %c2_19 = arith.constant 2 : index
    %c0_20 = arith.constant 0 : index
    %30 = vector.load %arg15[%c2_19, %c0_20] : memref<12x32xf32, #tpu.memory_space<vmem>>, vector<8x32xf32>
    tpu.vector_store %arg15[%c2_19, %c0_20], %29 {strides = array<i32>} : memref<12x32xf32, #tpu.memory_space<vmem>>, vector<8x32xf32>,
    %31 = vector.extract_strided_slice %29 {offsets = [0, 0], sizes = [1, 32], strides = [1, 1]} : vector<8x32xf32> to vector<1x32xf32>
    %c0_21 = arith.constant 0 : index
    %c0_22 = arith.constant 0 : index
    %32 = vector.load %arg15[%c0_21, %c0_22] : memref<12x32xf32, #tpu.memory_space<vmem>>, vector<1x32xf32>
    tpu.vector_store %arg15[%c0_21, %c0_22], %31 {strides = array<i32>} : memref<12x32xf32, #tpu.memory_space<vmem>>, vector<1x32xf32>,
    %33 = vector.extract_strided_slice %29 {offsets = [0, 0], sizes = [1, 32], strides = [1, 1]} : vector<8x32xf32> to vector<1x32xf32>
    %c1_23 = arith.constant 1 : index
    %c0_24 = arith.constant 0 : index
    %34 = vector.load %arg15[%c1_23, %c0_24] : memref<12x32xf32, #tpu.memory_space<vmem>>, vector<1x32xf32>
    tpu.vector_store %arg15[%c1_23, %c0_24], %33 {strides = array<i32>} : memref<12x32xf32, #tpu.memory_space<vmem>>, vector<1x32xf32>,
    %35 = vector.extract_strided_slice %29 {offsets = [7, 0], sizes = [1, 32], strides = [1, 1]} : vector<8x32xf32> to vector<1x32xf32>
    %c10 = arith.constant 10 : index
    %c0_25 = arith.constant 0 : index
    %36 = vector.load %arg15[%c10, %c0_25] : memref<12x32xf32, #tpu.memory_space<vmem>>, vector<1x32xf32>
    tpu.vector_store %arg15[%c10, %c0_25], %35 {strides = array<i32>} : memref<12x32xf32, #tpu.memory_space<vmem>>, vector<1x32xf32>,
    %37 = vector.extract_strided_slice %29 {offsets = [7, 0], sizes = [1, 32], strides = [1, 1]} : vector<8x32xf32> to vector<1x32xf32>
    %c11 = arith.constant 11 : index
    %c0_26 = arith.constant 0 : index
    %38 = vector.load %arg15[%c11, %c0_26] : memref<12x32xf32, #tpu.memory_space<vmem>>, vector<1x32xf32>
    tpu.vector_store %arg15[%c11, %c0_26], %37 {strides = array<i32>} : memref<12x32xf32, #tpu.memory_space<vmem>>, vector<1x32xf32>,
    %c0_27 = arith.constant 0 : index
    %c0_28 = arith.constant 0 : index
    %39 = vector.load %arg15[%c0_27, %c0_28] : memref<12x32xf32, #tpu.memory_space<vmem>>, vector<8x32xf32>
    %40 = arith.truncf %39 : vector<8x32xf32> to vector<8x32xbf16>
    %c0_29 = arith.constant 0 : index
    %c0_30 = arith.constant 0 : index
    %c0_31 = arith.constant 0 : index
    %c0_32 = arith.constant 0 : index
    %41 = vector.load %arg4[%c0_29, %c0_30, %c0_31, %c0_32] : memref<1x5x32x32xbf16, #tpu.memory_space<vmem>>, vector<1x1x32x32xbf16>
    %42 = vector.shape_cast %41 : vector<1x1x32x32xbf16> to vector<32x32xbf16>
    %cst_33 = arith.constant dense<0.000000e+00> : vector<8x32xf32>
    %43 = tpu.matmul %40, %42, %cst_33 {dimension_numbers = #tpu.dot_dimension_numbers<[1], [0], [0], [1], [0, 0, 1, 1], [], []>} : vector<8x32xbf16>, vector<32x32xbf16>, vector<8x32xf32> -> vector<8x32xf32>
    %c1_34 = arith.constant 1 : index
    %c0_35 = arith.constant 0 : index
    %44 = vector.load %arg15[%c1_34, %c0_35] : memref<12x32xf32, #tpu.memory_space<vmem>>, vector<8x32xf32>
    %45 = arith.truncf %44 : vector<8x32xf32> to vector<8x32xbf16>
    %c0_36 = arith.constant 0 : index
    %c1_37 = arith.constant 1 : index
    %c0_38 = arith.constant 0 : index
    %c0_39 = arith.constant 0 : index
    %46 = vector.load %arg4[%c0_36, %c1_37, %c0_38, %c0_39] : memref<1x5x32x32xbf16, #tpu.memory_space<vmem>>, vector<1x1x32x32xbf16>
    %47 = vector.shape_cast %46 : vector<1x1x32x32xbf16> to vector<32x32xbf16>
    %cst_40 = arith.constant dense<0.000000e+00> : vector<8x32xf32>
    %48 = tpu.matmul %45, %47, %cst_40 {dimension_numbers = #tpu.dot_dimension_numbers<[1], [0], [0], [1], [0, 0, 1, 1], [], []>} : vector<8x32xbf16>, vector<32x32xbf16>, vector<8x32xf32> -> vector<8x32xf32>
    %49 = arith.addf %43, %48 : vector<8x32xf32>
    %c2_41 = arith.constant 2 : index
    %c0_42 = arith.constant 0 : index
    %50 = vector.load %arg15[%c2_41, %c0_42] : memref<12x32xf32, #tpu.memory_space<vmem>>, vector<8x32xf32>
    %51 = arith.truncf %50 : vector<8x32xf32> to vector<8x32xbf16>
    %c0_43 = arith.constant 0 : index
    %c2_44 = arith.constant 2 : index
    %c0_45 = arith.constant 0 : index
    %c0_46 = arith.constant 0 : index
    %52 = vector.load %arg4[%c0_43, %c2_44, %c0_45, %c0_46] : memref<1x5x32x32xbf16, #tpu.memory_space<vmem>>, vector<1x1x32x32xbf16>
    %53 = vector.shape_cast %52 : vector<1x1x32x32xbf16> to vector<32x32xbf16>
    %cst_47 = arith.constant dense<0.000000e+00> : vector<8x32xf32>
    %54 = tpu.matmul %51, %53, %cst_47 {dimension_numbers = #tpu.dot_dimension_numbers<[1], [0], [0], [1], [0, 0, 1, 1], [], []>} : vector<8x32xbf16>, vector<32x32xbf16>, vector<8x32xf32> -> vector<8x32xf32>
    %55 = arith.addf %49, %54 : vector<8x32xf32>
    %c3 = arith.constant 3 : index
    %c0_48 = arith.constant 0 : index
    %56 = vector.load %arg15[%c3, %c0_48] : memref<12x32xf32, #tpu.memory_space<vmem>>, vector<8x32xf32>
    %57 = arith.truncf %56 : vector<8x32xf32> to vector<8x32xbf16>
    %c0_49 = arith.constant 0 : index
    %c3_50 = arith.constant 3 : index
    %c0_51 = arith.constant 0 : index
    %c0_52 = arith.constant 0 : index
    %58 = vector.load %arg4[%c0_49, %c3_50, %c0_51, %c0_52] : memref<1x5x32x32xbf16, #tpu.memory_space<vmem>>, vector<1x1x32x32xbf16>
    %59 = vector.shape_cast %58 : vector<1x1x32x32xbf16> to vector<32x32xbf16>
    %cst_53 = arith.constant dense<0.000000e+00> : vector<8x32xf32>
    %60 = tpu.matmul %57, %59, %cst_53 {dimension_numbers = #tpu.dot_dimension_numbers<[1], [0], [0], [1], [0, 0, 1, 1], [], []>} : vector<8x32xbf16>, vector<32x32xbf16>, vector<8x32xf32> -> vector<8x32xf32>
    %61 = arith.addf %55, %60 : vector<8x32xf32>
    %c4 = arith.constant 4 : index
    %c0_54 = arith.constant 0 : index
    %62 = vector.load %arg15[%c4, %c0_54] : memref<12x32xf32, #tpu.memory_space<vmem>>, vector<8x32xf32>
    %63 = arith.truncf %62 : vector<8x32xf32> to vector<8x32xbf16>
    %c0_55 = arith.constant 0 : index
    %c4_56 = arith.constant 4 : index
    %c0_57 = arith.constant 0 : index
    %c0_58 = arith.constant 0 : index
    %64 = vector.load %arg4[%c0_55, %c4_56, %c0_57, %c0_58] : memref<1x5x32x32xbf16, #tpu.memory_space<vmem>>, vector<1x1x32x32xbf16>
    %65 = vector.shape_cast %64 : vector<1x1x32x32xbf16> to vector<32x32xbf16>
    %cst_59 = arith.constant dense<0.000000e+00> : vector<8x32xf32>
    %66 = tpu.matmul %63, %65, %cst_59 {dimension_numbers = #tpu.dot_dimension_numbers<[1], [0], [0], [1], [0, 0, 1, 1], [], []>} : vector<8x32xbf16>, vector<32x32xbf16>, vector<8x32xf32> -> vector<8x32xf32>
    %67 = arith.addf %61, %66 : vector<8x32xf32>
    %c0_60 = arith.constant 0 : index
    %c0_61 = arith.constant 0 : index
    %c0_62 = arith.constant 0 : index
    %68 = vector.load %arg5[%c0_60, %c0_61, %c0_62] : memref<1x3x32xf32, #tpu.memory_space<vmem>>, vector<1x1x32xf32>
    %69 = vector.shape_cast %68 : vector<1x1x32xf32> to vector<1x32xf32>
    %70 = vector.broadcast %69 : vector<1x32xf32> to vector<8x32xf32>
    %71 = arith.addf %67, %70 : vector<8x32xf32>
    %cst_63 = arith.constant 0.000000e+00 : f32
    %72 = vector.broadcast %cst_63 : f32 to vector<8x32xf32>
    %73 = arith.cmpf oge, %71, %72 : vector<8x32xf32>
    %cst_64 = arith.constant 2.000000e-01 : f32
    %74 = vector.broadcast %cst_64 : f32 to vector<8x32xf32>
    %75 = arith.mulf %74, %71 : vector<8x32xf32>
    %76 = arith.select %73, %71, %75 : vector<8x32xi1>, vector<8x32xf32>
    %c0_65 = arith.constant 0 : index
    %c1_66 = arith.constant 1 : index
    %c0_67 = arith.constant 0 : index
    %77 = vector.load %arg5[%c0_65, %c1_66, %c0_67] : memref<1x3x32xf32, #tpu.memory_space<vmem>>, vector<1x1x32xf32>
    %78 = vector.shape_cast %77 : vector<1x1x32xf32> to vector<1x32xf32>
    %79 = vector.broadcast %78 : vector<1x32xf32> to vector<8x32xf32>
    %80 = arith.mulf %76, %79 : vector<8x32xf32>
    %c0_68 = arith.constant 0 : index
    %c2_69 = arith.constant 2 : index
    %c0_70 = arith.constant 0 : index
    %81 = vector.load %arg5[%c0_68, %c2_69, %c0_70] : memref<1x3x32xf32, #tpu.memory_space<vmem>>, vector<1x1x32xf32>
    %82 = vector.shape_cast %81 : vector<1x1x32xf32> to vector<1x32xf32>
    %83 = vector.broadcast %82 : vector<1x32xf32> to vector<8x32xf32>
    %84 = arith.addf %80, %83 : vector<8x32xf32>
    %c0_71 = arith.constant 0 : index
    %c0_72 = arith.constant 0 : index
    %85 = vector.load %arg16[%c0_71, %c0_72] : memref<8x32xf32, #tpu.memory_space<vmem>>, vector<8x32xf32>
    tpu.vector_store %arg16[%c0_71, %c0_72], %84 {strides = array<i32>} : memref<8x32xf32, #tpu.memory_space<vmem>>, vector<8x32xf32>,
    %c0_73 = arith.constant 0 : index
    %c0_74 = arith.constant 0 : index
    %86 = tpu.strided_load %arg16[%c0_73, %c0_74] {strides = array<i32: 2, 1>} : memref<8x32xf32, #tpu.memory_space<vmem>>, vector<4x32xf32>
    %c1_75 = arith.constant 1 : index
    %c0_76 = arith.constant 0 : index
    %87 = tpu.strided_load %arg16[%c1_75, %c0_76] {strides = array<i32: 2, 1>} : memref<8x32xf32, #tpu.memory_space<vmem>>, vector<4x32xf32>
    %88 = arith.maximumf %86, %87 : vector<4x32xf32>
    %89 = arith.truncf %88 : vector<4x32xf32> to vector<4x32xbf16>
    %c0_77 = arith.constant 0 : index
    %c0_78 = arith.constant 0 : index
    %90 = vector.load %arg6[%c0_77, %c0_78] : memref<32x32xbf16, #tpu.memory_space<vmem>>, vector<32x32xbf16>
    %cst_79 = arith.constant dense<0.000000e+00> : vector<4x32xf32>
    %91 = tpu.matmul %89, %90, %cst_79 {dimension_numbers = #tpu.dot_dimension_numbers<[1], [0], [0], [1], [0, 0, 1, 1], [], []>} : vector<4x32xbf16>, vector<32x32xbf16>, vector<4x32xf32> -> vector<4x32xf32>
    %c3_80 = arith.constant 3 : index
    %c0_81 = arith.constant 0 : index
    %92 = vector.load %arg3[%c3_80, %c0_81] : memref<4x32xf32, #tpu.memory_space<vmem>>, vector<1x32xf32>
    %93 = vector.broadcast %92 : vector<1x32xf32> to vector<4x32xf32>
    %94 = arith.addf %91, %93 : vector<4x32xf32>
    %95 = arith.truncf %94 : vector<4x32xf32> to vector<4x32xbf16>
    %c0_82 = arith.constant 0 : index
    %c0_83 = arith.constant 0 : index
    %c0_84 = arith.constant 0 : index
    %96 = vector.load %arg7[%c0_82, %c0_83, %c0_84] : memref<1x32x96xbf16, #tpu.memory_space<vmem>>, vector<1x32x96xbf16>
    %97 = vector.shape_cast %96 : vector<1x32x96xbf16> to vector<32x96xbf16>
    %cst_85 = arith.constant dense<0.000000e+00> : vector<4x96xf32>
    %98 = tpu.matmul %95, %97, %cst_85 {dimension_numbers = #tpu.dot_dimension_numbers<[1], [0], [0], [1], [0, 0, 1, 1], [], []>} : vector<4x32xbf16>, vector<32x96xbf16>, vector<4x96xf32> -> vector<4x96xf32>
    %c0_86 = arith.constant 0 : index
    %c0_87 = arith.constant 0 : index
    %c0_88 = arith.constant 0 : index
    %99 = vector.load %arg11[%c0_86, %c0_87, %c0_88] : memref<1x1x96xf32, #tpu.memory_space<vmem>>, vector<1x1x96xf32>
    %100 = vector.shape_cast %99 : vector<1x1x96xf32> to vector<1x96xf32>
    %101 = vector.broadcast %100 : vector<1x96xf32> to vector<4x96xf32>
    %102 = arith.addf %98, %101 : vector<4x96xf32>
    %103 = vector.extract_strided_slice %102 {offsets = [0, 0], sizes = [4, 16], strides = [1, 1]} : vector<4x96xf32> to vector<4x16xf32>
    %104 = arith.truncf %103 : vector<4x16xf32> to vector<4x16xbf16>
    %105 = vector.extract_strided_slice %102 {offsets = [0, 32], sizes = [4, 16], strides = [1, 1]} : vector<4x96xf32> to vector<4x16xf32>
    %106 = arith.truncf %105 : vector<4x16xf32> to vector<4x16xbf16>
    %107 = vector.extract_strided_slice %102 {offsets = [0, 64], sizes = [4, 16], strides = [1, 1]} : vector<4x96xf32> to vector<4x16xf32>
    %108 = arith.truncf %107 : vector<4x16xf32> to vector<4x16xbf16>
    %cst_89 = arith.constant dense<0.000000e+00> : vector<4x4xf32>
    %109 = tpu.matmul %104, %106, %cst_89 {dimension_numbers = #tpu.dot_dimension_numbers<[1], [1], [0], [0], [0, 0, 1, 0], [], []>} : vector<4x16xbf16>, vector<4x16xbf16>, vector<4x4xf32> -> vector<4x4xf32>
    %cst_90 = arith.constant dense<0xFF800000> : vector<4xf32>
    %110 = vector.multi_reduction <maximumf>, %109, %cst_90 [1] : vector<4x4xf32> to vector<4xf32>
    %111 = vector.shape_cast %110 : vector<4xf32> to vector<4x1xf32>
    %112 = vector.broadcast %111 : vector<4x1xf32> to vector<4x4xf32>
    %113 = arith.subf %109, %112 : vector<4x4xf32>
    %114 = math.exp %113 : vector<4x4xf32>
    %cst_91 = arith.constant dense<0.000000e+00> : vector<4xf32>
    %115 = vector.multi_reduction <add>, %114, %cst_91 [1] : vector<4x4xf32> to vector<4xf32>
    %116 = vector.shape_cast %115 : vector<4xf32> to vector<4x1xf32>
    %117 = tpu.reciprocal %116 {approx = true} : vector<4x1xf32> -> vector<4x1xf32>
    %118 = vector.broadcast %117 : vector<4x1xf32> to vector<4x4xf32>
    %119 = arith.mulf %114, %118 : vector<4x4xf32>
    %120 = arith.truncf %119 : vector<4x4xf32> to vector<4x4xbf16>
    %cst_92 = arith.constant dense<0.000000e+00> : vector<4x16xf32>
    %121 = tpu.matmul %120, %108, %cst_92 {dimension_numbers = #tpu.dot_dimension_numbers<[1], [0], [0], [1], [0, 0, 1, 1], [], []>} : vector<4x4xbf16>, vector<4x16xbf16>, vector<4x16xf32> -> vector<4x16xf32>
    %122 = vector.extract_strided_slice %102 {offsets = [0, 16], sizes = [4, 16], strides = [1, 1]} : vector<4x96xf32> to vector<4x16xf32>
    %123 = arith.truncf %122 : vector<4x16xf32> to vector<4x16xbf16>
    %124 = vector.extract_strided_slice %102 {offsets = [0, 48], sizes = [4, 16], strides = [1, 1]} : vector<4x96xf32> to vector<4x16xf32>
    %125 = arith.truncf %124 : vector<4x16xf32> to vector<4x16xbf16>
    %126 = vector.extract_strided_slice %102 {offsets = [0, 80], sizes = [4, 16], strides = [1, 1]} : vector<4x96xf32> to vector<4x16xf32>
    %127 = arith.truncf %126 : vector<4x16xf32> to vector<4x16xbf16>
    %cst_93 = arith.constant dense<0.000000e+00> : vector<4x4xf32>
    %128 = tpu.matmul %123, %125, %cst_93 {dimension_numbers = #tpu.dot_dimension_numbers<[1], [1], [0], [0], [0, 0, 1, 0], [], []>} : vector<4x16xbf16>, vector<4x16xbf16>, vector<4x4xf32> -> vector<4x4xf32>
    %cst_94 = arith.constant dense<0xFF800000> : vector<4xf32>
    %129 = vector.multi_reduction <maximumf>, %128, %cst_94 [1] : vector<4x4xf32> to vector<4xf32>
    %130 = vector.shape_cast %129 : vector<4xf32> to vector<4x1xf32>
    %131 = vector.broadcast %130 : vector<4x1xf32> to vector<4x4xf32>
    %132 = arith.subf %128, %131 : vector<4x4xf32>
    %133 = math.exp %132 : vector<4x4xf32>
    %cst_95 = arith.constant dense<0.000000e+00> : vector<4xf32>
    %134 = vector.multi_reduction <add>, %133, %cst_95 [1] : vector<4x4xf32> to vector<4xf32>
    %135 = vector.shape_cast %134 : vector<4xf32> to vector<4x1xf32>
    %136 = tpu.reciprocal %135 {approx = true} : vector<4x1xf32> -> vector<4x1xf32>
    %137 = vector.broadcast %136 : vector<4x1xf32> to vector<4x4xf32>
    %138 = arith.mulf %133, %137 : vector<4x4xf32>
    %139 = arith.truncf %138 : vector<4x4xf32> to vector<4x4xbf16>
    %cst_96 = arith.constant dense<0.000000e+00> : vector<4x16xf32>
    %140 = tpu.matmul %139, %127, %cst_96 {dimension_numbers = #tpu.dot_dimension_numbers<[1], [0], [0], [1], [0, 0, 1, 1], [], []>} : vector<4x4xbf16>, vector<4x16xbf16>, vector<4x16xf32> -> vector<4x16xf32>
    %141 = tpu.concatenate %121, %140 in 1 : vector<4x16xf32>, vector<4x16xf32> -> vector<4x32xf32>
    %142 = arith.truncf %141 : vector<4x32xf32> to vector<4x32xbf16>
    %c0_97 = arith.constant 0 : index
    %c0_98 = arith.constant 0 : index
    %c0_99 = arith.constant 0 : index
    %143 = vector.load %arg8[%c0_97, %c0_98, %c0_99] : memref<1x32x32xbf16, #tpu.memory_space<vmem>>, vector<1x32x32xbf16>
    %144 = vector.shape_cast %143 : vector<1x32x32xbf16> to vector<32x32xbf16>
    %cst_100 = arith.constant dense<0.000000e+00> : vector<4x32xf32>
    %145 = tpu.matmul %142, %144, %cst_100 {dimension_numbers = #tpu.dot_dimension_numbers<[1], [0], [0], [1], [0, 0, 1, 1], [], []>} : vector<4x32xbf16>, vector<32x32xbf16>, vector<4x32xf32> -> vector<4x32xf32>
    %c0_101 = arith.constant 0 : index
    %c0_102 = arith.constant 0 : index
    %c0_103 = arith.constant 0 : index
    %146 = vector.load %arg13[%c0_101, %c0_102, %c0_103] : memref<1x6x32xf32, #tpu.memory_space<vmem>>, vector<1x1x32xf32>
    %147 = vector.shape_cast %146 : vector<1x1x32xf32> to vector<1x32xf32>
    %148 = vector.broadcast %147 : vector<1x32xf32> to vector<4x32xf32>
    %149 = arith.addf %145, %148 : vector<4x32xf32>
    %150 = arith.addf %94, %149 : vector<4x32xf32>
    %c0_104 = arith.constant 0 : index
    %c1_105 = arith.constant 1 : index
    %c0_106 = arith.constant 0 : index
    %151 = vector.load %arg13[%c0_104, %c1_105, %c0_106] : memref<1x6x32xf32, #tpu.memory_space<vmem>>, vector<1x1x32xf32>
    %152 = vector.shape_cast %151 : vector<1x1x32xf32> to vector<1x32xf32>
    %c0_107 = arith.constant 0 : index
    %c2_108 = arith.constant 2 : index
    %c0_109 = arith.constant 0 : index
    %153 = vector.load %arg13[%c0_107, %c2_108, %c0_109] : memref<1x6x32xf32, #tpu.memory_space<vmem>>, vector<1x1x32xf32>
    %154 = vector.shape_cast %153 : vector<1x1x32xf32> to vector<1x32xf32>
    %cst_110 = arith.constant dense<0.000000e+00> : vector<4xf32>
    %155 = vector.multi_reduction <add>, %150, %cst_110 [1] : vector<4x32xf32> to vector<4xf32>
    %156 = vector.shape_cast %155 : vector<4xf32> to vector<4x1xf32>
    %cst_111 = arith.constant 3.200000e+01 : f32
    %157 = vector.broadcast %cst_111 : f32 to vector<4x1xf32>
    %158 = arith.divf %156, %157 : vector<4x1xf32>
    %159 = vector.broadcast %158 : vector<4x1xf32> to vector<4x32xf32>
    %160 = arith.subf %150, %159 : vector<4x32xf32>
    %161 = arith.mulf %160, %160 : vector<4x32xf32>
    %cst_112 = arith.constant dense<0.000000e+00> : vector<4xf32>
    %162 = vector.multi_reduction <add>, %161, %cst_112 [1] : vector<4x32xf32> to vector<4xf32>
    %163 = vector.shape_cast %162 : vector<4xf32> to vector<4x1xf32>
    %cst_113 = arith.constant 3.200000e+01 : f32
    %164 = vector.broadcast %cst_113 : f32 to vector<4x1xf32>
    %165 = arith.divf %163, %164 : vector<4x1xf32>
    %166 = vector.broadcast %158 : vector<4x1xf32> to vector<4x32xf32>
    %167 = arith.subf %150, %166 : vector<4x32xf32>
    %cst_114 = arith.constant 9.99999974E-6 : f32
    %168 = vector.broadcast %cst_114 : f32 to vector<4x1xf32>
    %169 = arith.addf %165, %168 : vector<4x1xf32>
    %170 = math.rsqrt %169 : vector<4x1xf32>
    %171 = vector.broadcast %170 : vector<4x1xf32> to vector<4x32xf32>
    %172 = arith.mulf %167, %171 : vector<4x32xf32>
    %173 = vector.broadcast %152 : vector<1x32xf32> to vector<4x32xf32>
    %174 = arith.mulf %172, %173 : vector<4x32xf32>
    %175 = vector.broadcast %154 : vector<1x32xf32> to vector<4x32xf32>
    %176 = arith.addf %174, %175 : vector<4x32xf32>
    %177 = arith.truncf %176 : vector<4x32xf32> to vector<4x32xbf16>
    %c0_115 = arith.constant 0 : index
    %c0_116 = arith.constant 0 : index
    %c0_117 = arith.constant 0 : index
    %178 = vector.load %arg9[%c0_115, %c0_116, %c0_117] : memref<1x32x64xbf16, #tpu.memory_space<vmem>>, vector<1x32x64xbf16>
    %179 = vector.shape_cast %178 : vector<1x32x64xbf16> to vector<32x64xbf16>
    %cst_118 = arith.constant dense<0.000000e+00> : vector<4x64xf32>
    %180 = tpu.matmul %177, %179, %cst_118 {dimension_numbers = #tpu.dot_dimension_numbers<[1], [0], [0], [1], [0, 0, 1, 1], [], []>} : vector<4x32xbf16>, vector<32x64xbf16>, vector<4x64xf32> -> vector<4x64xf32>
    %c0_119 = arith.constant 0 : index
    %c0_120 = arith.constant 0 : index
    %c0_121 = arith.constant 0 : index
    %181 = vector.load %arg12[%c0_119, %c0_120, %c0_121] : memref<1x1x64xf32, #tpu.memory_space<vmem>>, vector<1x1x64xf32>
    %182 = vector.shape_cast %181 : vector<1x1x64xf32> to vector<1x64xf32>
    %183 = vector.broadcast %182 : vector<1x64xf32> to vector<4x64xf32>
    %184 = arith.addf %180, %183 : vector<4x64xf32>
    %185 = arith.mulf %184, %184 : vector<4x64xf32>
    %186 = arith.mulf %184, %185 : vector<4x64xf32>
    %cst_122 = arith.constant 4.471500e-02 : f32
    %187 = vector.broadcast %cst_122 : f32 to vector<4x64xf32>
    %188 = arith.mulf %187, %186 : vector<4x64xf32>
    %189 = arith.addf %184, %188 : vector<4x64xf32>
    %cst_123 = arith.constant 0.797884583 : f32
    %190 = vector.broadcast %cst_123 : f32 to vector<4x64xf32>
    %191 = arith.mulf %190, %189 : vector<4x64xf32>
    %192 = math.tanh %191 : vector<4x64xf32>
    %cst_124 = arith.constant 1.000000e+00 : f32
    %193 = vector.broadcast %cst_124 : f32 to vector<4x64xf32>
    %194 = arith.addf %193, %192 : vector<4x64xf32>
    %cst_125 = arith.constant 5.000000e-01 : f32
    %195 = vector.broadcast %cst_125 : f32 to vector<4x64xf32>
    %196 = arith.mulf %195, %194 : vector<4x64xf32>
    %197 = arith.mulf %184, %196 : vector<4x64xf32>
    %198 = arith.truncf %197 : vector<4x64xf32> to vector<4x64xbf16>
    %c0_126 = arith.constant 0 : index
    %c0_127 = arith.constant 0 : index
    %c0_128 = arith.constant 0 : index
    %199 = vector.load %arg10[%c0_126, %c0_127, %c0_128] : memref<1x64x32xbf16, #tpu.memory_space<vmem>>, vector<1x64x32xbf16>
    %200 = vector.shape_cast %199 : vector<1x64x32xbf16> to vector<64x32xbf16>
    %cst_129 = arith.constant dense<0.000000e+00> : vector<4x32xf32>
    %201 = tpu.matmul %198, %200, %cst_129 {dimension_numbers = #tpu.dot_dimension_numbers<[1], [0], [0], [1], [0, 0, 1, 1], [], []>} : vector<4x64xbf16>, vector<64x32xbf16>, vector<4x32xf32> -> vector<4x32xf32>
    %c0_130 = arith.constant 0 : index
    %c3_131 = arith.constant 3 : index
    %c0_132 = arith.constant 0 : index
    %202 = vector.load %arg13[%c0_130, %c3_131, %c0_132] : memref<1x6x32xf32, #tpu.memory_space<vmem>>, vector<1x1x32xf32>
    %203 = vector.shape_cast %202 : vector<1x1x32xf32> to vector<1x32xf32>
    %204 = vector.broadcast %203 : vector<1x32xf32> to vector<4x32xf32>
    %205 = arith.addf %201, %204 : vector<4x32xf32>
    %206 = arith.addf %176, %205 : vector<4x32xf32>
    %c0_133 = arith.constant 0 : index
    %c4_134 = arith.constant 4 : index
    %c0_135 = arith.constant 0 : index
    %207 = vector.load %arg13[%c0_133, %c4_134, %c0_135] : memref<1x6x32xf32, #tpu.memory_space<vmem>>, vector<1x1x32xf32>
    %208 = vector.shape_cast %207 : vector<1x1x32xf32> to vector<1x32xf32>
    %c0_136 = arith.constant 0 : index
    %c5 = arith.constant 5 : index
    %c0_137 = arith.constant 0 : index
    %209 = vector.load %arg13[%c0_136, %c5, %c0_137] : memref<1x6x32xf32, #tpu.memory_space<vmem>>, vector<1x1x32xf32>
    %210 = vector.shape_cast %209 : vector<1x1x32xf32> to vector<1x32xf32>
    %cst_138 = arith.constant dense<0.000000e+00> : vector<4xf32>
    %211 = vector.multi_reduction <add>, %206, %cst_138 [1] : vector<4x32xf32> to vector<4xf32>
    %212 = vector.shape_cast %211 : vector<4xf32> to vector<4x1xf32>
    %cst_139 = arith.constant 3.200000e+01 : f32
    %213 = vector.broadcast %cst_139 : f32 to vector<4x1xf32>
    %214 = arith.divf %212, %213 : vector<4x1xf32>
    %215 = vector.broadcast %214 : vector<4x1xf32> to vector<4x32xf32>
    %216 = arith.subf %206, %215 : vector<4x32xf32>
    %217 = arith.mulf %216, %216 : vector<4x32xf32>
    %cst_140 = arith.constant dense<0.000000e+00> : vector<4xf32>
    %218 = vector.multi_reduction <add>, %217, %cst_140 [1] : vector<4x32xf32> to vector<4xf32>
    %219 = vector.shape_cast %218 : vector<4xf32> to vector<4x1xf32>
    %cst_141 = arith.constant 3.200000e+01 : f32
    %220 = vector.broadcast %cst_141 : f32 to vector<4x1xf32>
    %221 = arith.divf %219, %220 : vector<4x1xf32>
    %222 = vector.broadcast %214 : vector<4x1xf32> to vector<4x32xf32>
    %223 = arith.subf %206, %222 : vector<4x32xf32>
    %cst_142 = arith.constant 9.99999974E-6 : f32
    %224 = vector.broadcast %cst_142 : f32 to vector<4x1xf32>
    %225 = arith.addf %221, %224 : vector<4x1xf32>
    %226 = math.rsqrt %225 : vector<4x1xf32>
    %227 = vector.broadcast %226 : vector<4x1xf32> to vector<4x32xf32>
    %228 = arith.mulf %223, %227 : vector<4x32xf32>
    %229 = vector.broadcast %208 : vector<1x32xf32> to vector<4x32xf32>
    %230 = arith.mulf %228, %229 : vector<4x32xf32>
    %231 = vector.broadcast %210 : vector<1x32xf32> to vector<4x32xf32>
    %232 = arith.addf %230, %231 : vector<4x32xf32>
    %c0_143 = arith.constant 0 : index
    %c0_144 = arith.constant 0 : index
    %c0_145 = arith.constant 0 : index
    %233 = vector.load %arg14[%c0_143, %c0_144, %c0_145] : memref<1x4x32xf32, #tpu.memory_space<vmem>>, vector<1x4x32xf32>
    %234 = vector.shape_cast %233 : vector<1x4x32xf32> to vector<4x32xf32>
    %235 = vector.shape_cast %232 : vector<4x32xf32> to vector<1x4x32xf32>
    tpu.vector_store %arg14[%c0_143, %c0_144, %c0_145], %235 {strides = array<i32>} : memref<1x4x32xf32, #tpu.memory_space<vmem>>, vector<1x4x32xf32>,
    return
  }
  func.func @transform_0(%arg0: i32) -> (i32, i32, i32) {
    %c0_i32 = arith.constant 0 : i32
    %c0_i32_0 = arith.constant 0 : i32
    %c0_i32_1 = arith.constant 0 : i32
    return %arg0, %c0_i32, %c0_i32_0 : i32, i32, i32
  }
  func.func @transform_1(%arg0: i32) -> (i32, i32, i32) {
    %c0_i32 = arith.constant 0 : i32
    %c0_i32_0 = arith.constant 0 : i32
    %c0_i32_1 = arith.constant 0 : i32
    %c0_i32_2 = arith.constant 0 : i32
    return %c0_i32, %c0_i32_0, %c0_i32_1 : i32, i32, i32
  }
  func.func @transform_2(%arg0: i32) -> (i32, i32) {
    %c0_i32 = arith.constant 0 : i32
    %c0_i32_0 = arith.constant 0 : i32
    %c0_i32_1 = arith.constant 0 : i32
    return %c0_i32, %c0_i32_0 : i32, i32
  }
  func.func @transform_3(%arg0: i32) -> (i32, i32, i32, i32) {
    %c0_i32 = arith.constant 0 : i32
    %c0_i32_0 = arith.constant 0 : i32
    %c0_i32_1 = arith.constant 0 : i32
    %c0_i32_2 = arith.constant 0 : i32
    %c0_i32_3 = arith.constant 0 : i32
    return %c0_i32, %c0_i32_0, %c0_i32_1, %c0_i32_2 : i32, i32, i32, i32
  }
  func.func @transform_4(%arg0: i32) -> (i32, i32, i32) {
    %c0_i32 = arith.constant 0 : i32
    %c0_i32_0 = arith.constant 0 : i32
    %c0_i32_1 = arith.constant 0 : i32
    %c0_i32_2 = arith.constant 0 : i32
    return %c0_i32, %c0_i32_0, %c0_i32_1 : i32, i32, i32
  }
  func.func @transform_5(%arg0: i32) -> (i32, i32) {
    %c0_i32 = arith.constant 0 : i32
    %c0_i32_0 = arith.constant 0 : i32
    %c0_i32_1 = arith.constant 0 : i32
    return %c0_i32, %c0_i32_0 : i32, i32
  }
  func.func @transform_6(%arg0: i32) -> (i32, i32, i32) {
    %c0_i32 = arith.constant 0 : i32
    %c0_i32_0 = arith.constant 0 : i32
    %c0_i32_1 = arith.constant 0 : i32
    %c0_i32_2 = arith.constant 0 : i32
    return %c0_i32, %c0_i32_0, %c0_i32_1 : i32, i32, i32
  }
  func.func @transform_7(%arg0: i32) -> (i32, i32, i32) {
    %c0_i32 = arith.constant 0 : i32
    %c0_i32_0 = arith.constant 0 : i32
    %c0_i32_1 = arith.constant 0 : i32
    %c0_i32_2 = arith.constant 0 : i32
    return %c0_i32, %c0_i32_0, %c0_i32_1 : i32, i32, i32
  }
  func.func @transform_8(%arg0: i32) -> (i32, i32, i32) {
    %c0_i32 = arith.constant 0 : i32
    %c0_i32_0 = arith.constant 0 : i32
    %c0_i32_1 = arith.constant 0 : i32
    %c0_i32_2 = arith.constant 0 : i32
    return %c0_i32, %c0_i32_0, %c0_i32_1 : i32, i32, i32
  }
  func.func @transform_9(%arg0: i32) -> (i32, i32, i32) {
    %c0_i32 = arith.constant 0 : i32
    %c0_i32_0 = arith.constant 0 : i32
    %c0_i32_1 = arith.constant 0 : i32
    %c0_i32_2 = arith.constant 0 : i32
    return %c0_i32, %c0_i32_0, %c0_i32_1 : i32, i32, i32
  }
  func.func @transform_10(%arg0: i32) -> (i32, i32, i32) {
    %c0_i32 = arith.constant 0 : i32
    %c0_i32_0 = arith.constant 0 : i32
    %c0_i32_1 = arith.constant 0 : i32
    %c0_i32_2 = arith.constant 0 : i32
    return %c0_i32, %c0_i32_0, %c0_i32_1 : i32, i32, i32
  }
  func.func @transform_11(%arg0: i32) -> (i32, i32, i32) {
    %c0_i32 = arith.constant 0 : i32
    %c0_i32_0 = arith.constant 0 : i32
    %c0_i32_1 = arith.constant 0 : i32
    %c0_i32_2 = arith.constant 0 : i32
    return %c0_i32, %c0_i32_0, %c0_i32_1 : i32, i32, i32
  }
  func.func @transform_12(%arg0: i32) -> (i32, i32, i32) {
    %c0_i32 = arith.constant 0 : i32
    %c0_i32_0 = arith.constant 0 : i32
    %c0_i32_1 = arith.constant 0 : i32
    %c0_i32_2 = arith.constant 0 : i32
    return %c0_i32, %c0_i32_0, %c0_i32_1 : i32, i32, i32
  }
  func.func @transform_13(%arg0: i32) -> (i32, i32, i32) {
    %c0_i32 = arith.constant 0 : i32
    %c0_i32_0 = arith.constant 0 : i32
    %c0_i32_1 = arith.constant 0 : i32
    return %arg0, %c0_i32, %c0_i32_0 : i32, i32, i32
  }
}

</mosaic_0001>

<llo_original>
// kernel: transformer_encoder_forward.1
$region0: #{transformer_encoder_forward.1}
  #allocation0 [shape = 'u32[]', space=smem, size = 0x4, offset = 0x4, fixed_abs, tag = 'smem constant byte address 0x4 - core index']
  #allocation1 [shape = 'u32[144,128]{1,0:T(1,128)}', space=vmem, size = 0x12000, scoped, tag = 'internal scratch']
  #allocation2 [shape = 'f32[12,32]{1,0:T(8,128)}', space=vmem, size = 0x2000, scoped, tag = 'scratch operand']
  #allocation3 [shape = 'f32[8,32]{1,0:T(8,128)}', space=vmem, size = 0x1000, scoped, tag = 'scratch operand']
  %s0 = inlined_call_operand.vmem [shape: bf16[2,10,32], index: 0, kind: input, shape index: {}]
  %s1 = inlined_call_operand.vmem [shape: bf16[3,32,32], index: 1, kind: input, shape index: {}]
  %s2 = inlined_call_operand.vmem [shape: f32[4,32], index: 2, kind: input, shape index: {}]
  %s3 = inlined_call_operand.vmem [shape: bf16[1,5,32,32], index: 3, kind: input, shape index: {}]
  %s4 = inlined_call_operand.vmem [shape: f32[1,3,32], index: 4, kind: input, shape index: {}]
  %s5 = inlined_call_operand.vmem [shape: bf16[32,32], index: 5, kind: input, shape index: {}]
  %s6 = inlined_call_operand.vmem [shape: bf16[1,32,96], index: 6, kind: input, shape index: {}]
  %s7 = inlined_call_operand.vmem [shape: bf16[1,32,32], index: 7, kind: input, shape index: {}]
  %s8 = inlined_call_operand.vmem [shape: bf16[1,32,64], index: 8, kind: input, shape index: {}]
  %s9 = inlined_call_operand.vmem [shape: bf16[1,64,32], index: 9, kind: input, shape index: {}]
  %s10 = inlined_call_operand.vmem [shape: f32[1,1,96], index: 10, kind: input, shape index: {}]
  %s11 = inlined_call_operand.vmem [shape: f32[1,1,64], index: 11, kind: input, shape index: {}]
  %s12 = inlined_call_operand.vmem [shape: f32[1,6,32], index: 12, kind: input, shape index: {}]
  %s13 = inlined_call_operand.hbm [shape: f32[2,4,32], index: 13, kind: output, shape index: {}]
  %s14 = sld [smem:[#allocation0]]
  $region85: #{transformer_encoder_forward.1} parent=0
    _
  %s16 = ssub.s32 1, %s14
  %s17 = scalar_select 0, %s16, %s14
  $region1: #{transformer_encoder_forward.1} parent=0
    #allocation4 [shape = 'u8[4096]{0}', space=vmem, size = 0x1000, scoped, tag = 'output window, operand 0']
    #allocation5 [shape = 's32[2]{0}', space=sflag, size = 0x8, scoped, tag = 'scoped memory for transformer_encoder_forward.1']
    %18 = vsyncpa [#allocation5], 0
    %s19 = scalar_lea.sflag [#allocation5], 1
    %20 = vsyncpa %s19, 0
    loop: start=0, step=1, limit=4
    $region2: #{transformer_encoder_forward.1} parent=1 // loop_pre_header
      _
    $region3: #{transformer_encoder_forward.1} parent=1 // loop_header
      %s22 = sphi 0, %s26
      %p23 = scmp.ge.s32.totalorder %s22, 4
      %s32 = sphi 0, %s34
      %s35 = sphi 0, %s32
      %s36 = sphi 0, %s35
      %s52 = sphi 0, %s36
      %s56 = sphi 0, %s56
      %s58 = sphi 0, %s56
      %s59 = sphi 0, %s58
      %s73 = sphi 0, %s59
      %s77 = sphi 0, %s77
      %s79 = sphi 0, %s77
      %s80 = sphi 0, %s79
      %s94 = sphi 0, %s80
      %s98 = sphi 0, %s98
      %s100 = sphi 0, %s98
      %s101 = sphi 0, %s100
      %s115 = sphi 0, %s101
      %s119 = sphi 0, %s119
      %s121 = sphi 0, %s119
      %s122 = sphi 0, %s121
      %s136 = sphi 0, %s122
      %s140 = sphi 0, %s140
      %s142 = sphi 0, %s140
      %s143 = sphi 0, %s142
      %s157 = sphi 0, %s143
      %s161 = sphi 0, %s161
      %s163 = sphi 0, %s161
      %s164 = sphi 0, %s163
      %s178 = sphi 0, %s164
      %s182 = sphi 0, %s182
      %s184 = sphi 0, %s182
      %s185 = sphi 0, %s184
      %s199 = sphi 0, %s185
      %s203 = sphi 0, %s203
      %s205 = sphi 0, %s203
      %s206 = sphi 0, %s205
      %s220 = sphi 0, %s206
      %s224 = sphi 0, %s224
      %s226 = sphi 0, %s224
      %s227 = sphi 0, %s226
      %s241 = sphi 0, %s227
      %s245 = sphi 0, %s245
      %s247 = sphi 0, %s245
      %s248 = sphi 0, %s247
      %s262 = sphi 0, %s248
      %s266 = sphi 0, %s266
      %s268 = sphi 0, %s266
      %s269 = sphi 0, %s268
      %s283 = sphi 0, %s269
      %s287 = sphi 0, %s287
      %s289 = sphi 0, %s287
      %s290 = sphi 0, %s289
      %s304 = sphi 0, %s290
      %s310 = sphi 0, %s312
      %s313 = sphi 0, %s310
      %s314 = sphi 0, %s313
      %s330 = sphi 0, %s314
    $region4: #{transformer_encoder_forward.1} parent=1 // loop_header_branch
      %25 = sbr.rel (%p23) target = $region8
    $region5: #{transformer_encoder_forward.1} parent=1 // loop_body
      %s27 = ssub.s32 %s22, 1
      %s28 = ssub.s32 %s22, 2
      %s29 = sadd.s32 %s22, 1
      %s30 = ssub.s32 %s22, %s29
      %p31 = scmp.eq.s32.totalorder %s30, 0
      %s33 = sadd.s32 %s32, 1
      %s34 = scalar_select %p31, %s32, %s33
      %p37 = pneg %p31
      %p38 = scmp.eq.s32.totalorder %s22, 1
      %p39 = por %p37, %p38
      %p40 = scmp.ne.s32.totalorder %s32, %s35
      %p41 = scmp.eq.s32.totalorder %s22, 0
      %p42 = por %p40, %p41
      %p43 = scmp.ne.s32.totalorder %s32, %s35
      %p44 = scmp.eq.s32.totalorder %s27, 1
      %p45 = por %p43, %p44
      %p46 = scmp.ne.s32.totalorder %s35, %s36
      %p47 = scmp.eq.s32.totalorder %s27, 0
      %p48 = por %p46, %p47
      %p49 = scmp.ne.s32.totalorder %s35, %s36
      %p50 = scmp.eq.s32.totalorder %s28, 1
      %p51 = por %p49, %p50
      %p53 = scmp.ne.s32.totalorder %s36, %s52
      %p54 = scmp.eq.s32.totalorder %s28, 0
      %p55 = por %p53, %p54
      %s57 = sadd.s32 %s56, 1
      %p60 = scmp.eq.s32.totalorder %s22, 1
      %p61 = scmp.ne.s32.totalorder %s56, %s58
      %p62 = scmp.eq.s32.totalorder %s22, 0
      %p63 = por %p61, %p62
      %p64 = scmp.ne.s32.totalorder %s56, %s58
      %p65 = scmp.eq.s32.totalorder %s27, 1
      %p66 = por %p64, %p65
      %p67 = scmp.ne.s32.totalorder %s58, %s59
      %p68 = scmp.eq.s32.totalorder %s27, 0
      %p69 = por %p67, %p68
      %p70 = scmp.ne.s32.totalorder %s58, %s59
      %p71 = scmp.eq.s32.totalorder %s28, 1
      %p72 = por %p70, %p71
      %p74 = scmp.ne.s32.totalorder %s59, %s73
      %p75 = scmp.eq.s32.totalorder %s28, 0
      %p76 = por %p74, %p75
      %s78 = sadd.s32 %s77, 1
      %p81 = scmp.eq.s32.totalorder %s22, 1
      %p82 = scmp.ne.s32.totalorder %s77, %s79
      %p83 = scmp.eq.s32.totalorder %s22, 0
      %p84 = por %p82, %p83
      %p85 = scmp.ne.s32.totalorder %s77, %s79
      %p86 = scmp.eq.s32.totalorder %s27, 1
      %p87 = por %p85, %p86
      %p88 = scmp.ne.s32.totalorder %s79, %s80
      %p89 = scmp.eq.s32.totalorder %s27, 0
      %p90 = por %p88, %p89
      %p91 = scmp.ne.s32.totalorder %s79, %s80
      %p92 = scmp.eq.s32.totalorder %s28, 1
      %p93 = por %p91, %p92
      %p95 = scmp.ne.s32.totalorder %s80, %s94
      %p96 = scmp.eq.s32.totalorder %s28, 0
      %p97 = por %p95, %p96
      %s99 = sadd.s32 %s98, 1
      %p102 = scmp.eq.s32.totalorder %s22, 1
      %p103 = scmp.ne.s32.totalorder %s98, %s100
      %p104 = scmp.eq.s32.totalorder %s22, 0
      %p105 = por %p103, %p104
      %p106 = scmp.ne.s32.totalorder %s98, %s100
      %p107 = scmp.eq.s32.totalorder %s27, 1
      %p108 = por %p106, %p107
      %p109 = scmp.ne.s32.totalorder %s100, %s101
      %p110 = scmp.eq.s32.totalorder %s27, 0
      %p111 = por %p109, %p110
      %p112 = scmp.ne.s32.totalorder %s100, %s101
      %p113 = scmp.eq.s32.totalorder %s28, 1
      %p114 = por %p112, %p113
      %p116 = scmp.ne.s32.totalorder %s101, %s115
      %p117 = scmp.eq.s32.totalorder %s28, 0
      %p118 = por %p116, %p117
      %s120 = sadd.s32 %s119, 1
      %p123 = scmp.eq.s32.totalorder %s22, 1
      %p124 = scmp.ne.s32.totalorder %s119, %s121
      %p125 = scmp.eq.s32.totalorder %s22, 0
      %p126 = por %p124, %p125
      %p127 = scmp.ne.s32.totalorder %s119, %s121
      %p128 = scmp.eq.s32.totalorder %s27, 1
      %p129 = por %p127, %p128
      %p130 = scmp.ne.s32.totalorder %s121, %s122
      %p131 = scmp.eq.s32.totalorder %s27, 0
      %p132 = por %p130, %p131
      %p133 = scmp.ne.s32.totalorder %s121, %s122
      %p134 = scmp.eq.s32.totalorder %s28, 1
      %p135 = por %p133, %p134
      %p137 = scmp.ne.s32.totalorder %s122, %s136
      %p138 = scmp.eq.s32.totalorder %s28, 0
      %p139 = por %p137, %p138
      %s141 = sadd.s32 %s140, 1
      %p144 = scmp.eq.s32.totalorder %s22, 1
      %p145 = scmp.ne.s32.totalorder %s140, %s142
      %p146 = scmp.eq.s32.totalorder %s22, 0
      %p147 = por %p145, %p146
      %p148 = scmp.ne.s32.totalorder %s140, %s142
      %p149 = scmp.eq.s32.totalorder %s27, 1
      %p150 = por %p148, %p149
      %p151 = scmp.ne.s32.totalorder %s142, %s143
      %p152 = scmp.eq.s32.totalorder %s27, 0
      %p153 = por %p151, %p152
      %p154 = scmp.ne.s32.totalorder %s142, %s143
      %p155 = scmp.eq.s32.totalorder %s28, 1
      %p156 = por %p154, %p155
      %p158 = scmp.ne.s32.totalorder %s143, %s157
      %p159 = scmp.eq.s32.totalorder %s28, 0
      %p160 = por %p158, %p159
      %s162 = sadd.s32 %s161, 1
      %p165 = scmp.eq.s32.totalorder %s22, 1
      %p166 = scmp.ne.s32.totalorder %s161, %s163
      %p167 = scmp.eq.s32.totalorder %s22, 0
      %p168 = por %p166, %p167
      %p169 = scmp.ne.s32.totalorder %s161, %s163
      %p170 = scmp.eq.s32.totalorder %s27, 1
      %p171 = por %p169, %p170
      %p172 = scmp.ne.s32.totalorder %s163, %s164
      %p173 = scmp.eq.s32.totalorder %s27, 0
      %p174 = por %p172, %p173
      %p175 = scmp.ne.s32.totalorder %s163, %s164
      %p176 = scmp.eq.s32.totalorder %s28, 1
      %p177 = por %p175, %p176
      %p179 = scmp.ne.s32.totalorder %s164, %s178
      %p180 = scmp.eq.s32.totalorder %s28, 0
      %p181 = por %p179, %p180
      %s183 = sadd.s32 %s182, 1
      %p186 = scmp.eq.s32.totalorder %s22, 1
      %p187 = scmp.ne.s32.totalorder %s182, %s184
      %p188 = scmp.eq.s32.totalorder %s22, 0
      %p189 = por %p187, %p188
      %p190 = scmp.ne.s32.totalorder %s182, %s184
      %p191 = scmp.eq.s32.totalorder %s27, 1
      %p192 = por %p190, %p191
      %p193 = scmp.ne.s32.totalorder %s184, %s185
      %p194 = scmp.eq.s32.totalorder %s27, 0
      %p195 = por %p193, %p194
      %p196 = scmp.ne.s32.totalorder %s184, %s185
      %p197 = scmp.eq.s32.totalorder %s28, 1
      %p198 = por %p196, %p197
      %p200 = scmp.ne.s32.totalorder %s185, %s199
      %p201 = scmp.eq.s32.totalorder %s28, 0
      %p202 = por %p200, %p201
      %s204 = sadd.s32 %s203, 1
      %p207 = scmp.eq.s32.totalorder %s22, 1
      %p208 = scmp.ne.s32.totalorder %s203, %s205
      %p209 = scmp.eq.s32.totalorder %s22, 0
      %p210 = por %p208, %p209
      %p211 = scmp.ne.s32.totalorder %s203, %s205
      %p212 = scmp.eq.s32.totalorder %s27, 1
      %p213 = por %p211, %p212
      %p214 = scmp.ne.s32.totalorder %s205, %s206
      %p215 = scmp.eq.s32.totalorder %s27, 0
      %p216 = por %p214, %p215
      %p217 = scmp.ne.s32.totalorder %s205, %s206
      %p218 = scmp.eq.s32.totalorder %s28, 1
      %p219 = por %p217, %p218
      %p221 = scmp.ne.s32.totalorder %s206, %s220
      %p222 = scmp.eq.s32.totalorder %s28, 0
      %p223 = por %p221, %p222
      %s225 = sadd.s32 %s224, 1
      %p228 = scmp.eq.s32.totalorder %s22, 1
      %p229 = scmp.ne.s32.totalorder %s224, %s226
      %p230 = scmp.eq.s32.totalorder %s22, 0
      %p231 = por %p229, %p230
      %p232 = scmp.ne.s32.totalorder %s224, %s226
      %p233 = scmp.eq.s32.totalorder %s27, 1
      %p234 = por %p232, %p233
      %p235 = scmp.ne.s32.totalorder %s226, %s227
      %p236 = scmp.eq.s32.totalorder %s27, 0
      %p237 = por %p235, %p236
      %p238 = scmp.ne.s32.totalorder %s226, %s227
      %p239 = scmp.eq.s32.totalorder %s28, 1
      %p240 = por %p238, %p239
      %p242 = scmp.ne.s32.totalorder %s227, %s241
      %p243 = scmp.eq.s32.totalorder %s28, 0
      %p244 = por %p242, %p243
      %s246 = sadd.s32 %s245, 1
      %p249 = scmp.eq.s32.totalorder %s22, 1
      %p250 = scmp.ne.s32.totalorder %s245, %s247
      %p251 = scmp.eq.s32.totalorder %s22, 0
      %p252 = por %p250, %p251
      %p253 = scmp.ne.s32.totalorder %s245, %s247
      %p254 = scmp.eq.s32.totalorder %s27, 1
      %p255 = por %p253, %p254
      %p256 = scmp.ne.s32.totalorder %s247, %s248
      %p257 = scmp.eq.s32.totalorder %s27, 0
      %p258 = por %p256, %p257
      %p259 = scmp.ne.s32.totalorder %s247, %s248
      %p260 = scmp.eq.s32.totalorder %s28, 1
      %p261 = por %p259, %p260
      %p263 = scmp.ne.s32.totalorder %s248, %s262
      %p264 = scmp.eq.s32.totalorder %s28, 0
      %p265 = por %p263, %p264
      %s267 = sadd.s32 %s266, 1
      %p270 = scmp.eq.s32.totalorder %s22, 1
      %p271 = scmp.ne.s32.totalorder %s266, %s268
      %p272 = scmp.eq.s32.totalorder %s22, 0
      %p273 = por %p271, %p272
      %p274 = scmp.ne.s32.totalorder %s266, %s268
      %p275 = scmp.eq.s32.totalorder %s27, 1
      %p276 = por %p274, %p275
      %p277 = scmp.ne.s32.totalorder %s268, %s269
      %p278 = scmp.eq.s32.totalorder %s27, 0
      %p279 = por %p277, %p278
      %p280 = scmp.ne.s32.totalorder %s268, %s269
      %p281 = scmp.eq.s32.totalorder %s28, 1
      %p282 = por %p280, %p281
      %p284 = scmp.ne.s32.totalorder %s269, %s283
      %p285 = scmp.eq.s32.totalorder %s28, 0
      %p286 = por %p284, %p285
      %s288 = sadd.s32 %s287, 1
      %p291 = scmp.eq.s32.totalorder %s22, 1
      %p292 = scmp.ne.s32.totalorder %s287, %s289
      %p293 = scmp.eq.s32.totalorder %s22, 0
      %p294 = por %p292, %p293
      %p295 = scmp.ne.s32.totalorder %s287, %s289
      %p296 = scmp.eq.s32.totalorder %s27, 1
      %p297 = por %p295, %p296
      %p298 = scmp.ne.s32.totalorder %s289, %s290
      %p299 = scmp.eq.s32.totalorder %s27, 0
      %p300 = por %p298, %p299
      %p301 = scmp.ne.s32.totalorder %s289, %s290
      %p302 = scmp.eq.s32.totalorder %s28, 1
      %p303 = por %p301, %p302
      %p305 = scmp.ne.s32.totalorder %s290, %s304
      %p306 = scmp.eq.s32.totalorder %s28, 0
      %p307 = por %p305, %p306
      %s308 = ssub.s32 %s22, %s29
      %p309 = scmp.eq.s32.totalorder %s308, 0
      %s311 = sadd.s32 %s310, 1
      %s312 = scalar_select %p309, %s310, %s311
      %p315 = pneg %p309
      %p316 = scmp.eq.s32.totalorder %s22, 1
      %p317 = por %p315, %p316
      %p318 = scmp.ne.s32.totalorder %s310, %s313
      %p319 = scmp.eq.s32.totalorder %s22, 0
      %p320 = por %p318, %p319
      %p321 = scmp.ne.s32.totalorder %s310, %s313
      %p322 = scmp.eq.s32.totalorder %s27, 1
      %p323 = por %p321, %p322
      %p324 = scmp.ne.s32.totalorder %s313, %s314
      %p325 = scmp.eq.s32.totalorder %s27, 0
      %p326 = por %p324, %p325
      %p327 = scmp.ne.s32.totalorder %s313, %s314
      %p328 = scmp.eq.s32.totalorder %s28, 1
      %p329 = por %p327, %p328
      %p331 = scmp.ne.s32.totalorder %s314, %s330
      %p332 = scmp.eq.s32.totalorder %s28, 0
      %p333 = por %p331, %p332
      %p334 = scmp.le.s32.totalorder 1, %s22
      %p335 = scmp.lt.s32.totalorder %s22, 3
      %p336 = pnand %p334, %p335
      %p337 = pneg %p336
      // Predicated region
      $region9: #{transformer_encoder_forward.1} parent=5 // pred_check
        _
      $region10: #{transformer_encoder_forward.1} parent=5 // pred_check_branch
        %339 = sbr.rel (%p336) target = $region12
      $region11: #{transformer_encoder_forward.1} parent=5 // pred_region
        %s340 = ssub.s32 %s22, 1
        // Predicated region
        $region13: #{transformer_encoder_forward.1} parent=11 // pred_check
          %p341 = pneg %p69
        $region14: #{transformer_encoder_forward.1} parent=11 // pred_check_branch
          %343 = sbr.rel (%p341) target = $region16
        $region15: #{transformer_encoder_forward.1} parent=11 // pred_region
          _
        $region16: #{transformer_encoder_forward.1} parent=11 // pred_fallthru
          _
        // Predicated region
        $region17: #{transformer_encoder_forward.1} parent=11 // pred_check
          %p344 = pneg %p90
        $region18: #{transformer_encoder_forward.1} parent=11 // pred_check_branch
          %346 = sbr.rel (%p344) target = $region20
        $region19: #{transformer_encoder_forward.1} parent=11 // pred_region
          _
        $region20: #{transformer_encoder_forward.1} parent=11 // pred_fallthru
          _
        // Predicated region
        $region21: #{transformer_encoder_forward.1} parent=11 // pred_check
          %p347 = pneg %p111
        $region22: #{transformer_encoder_forward.1} parent=11 // pred_check_branch
          %349 = sbr.rel (%p347) target = $region24
        $region23: #{transformer_encoder_forward.1} parent=11 // pred_region
          _
        $region24: #{transformer_encoder_forward.1} parent=11 // pred_fallthru
          _
        // Predicated region
        $region25: #{transformer_encoder_forward.1} parent=11 // pred_check
          %p350 = pneg %p132
        $region26: #{transformer_encoder_forward.1} parent=11 // pred_check_branch
          %352 = sbr.rel (%p350) target = $region28
        $region27: #{transformer_encoder_forward.1} parent=11 // pred_region
          _
        $region28: #{transformer_encoder_forward.1} parent=11 // pred_fallthru
          _
        // Predicated region
        $region29: #{transformer_encoder_forward.1} parent=11 // pred_check
          %p353 = pneg %p153
        $region30: #{transformer_encoder_forward.1} parent=11 // pred_check_branch
          %355 = sbr.rel (%p353) target = $region32
        $region31: #{transformer_encoder_forward.1} parent=11 // pred_region
          _
        $region32: #{transformer_encoder_forward.1} parent=11 // pred_fallthru
          _
        // Predicated region
        $region33: #{transformer_encoder_forward.1} parent=11 // pred_check
          %p356 = pneg %p174
        $region34: #{transformer_encoder_forward.1} parent=11 // pred_check_branch
          %358 = sbr.rel (%p356) target = $region36
        $region35: #{transformer_encoder_forward.1} parent=11 // pred_region
          _
        $region36: #{transformer_encoder_forward.1} parent=11 // pred_fallthru
          _
        // Predicated region
        $region37: #{transformer_encoder_forward.1} parent=11 // pred_check
          %p359 = pneg %p195
        $region38: #{transformer_encoder_forward.1} parent=11 // pred_check_branch
          %361 = sbr.rel (%p359) target = $region40
        $region39: #{transformer_encoder_forward.1} parent=11 // pred_region
          _
        $region40: #{transformer_encoder_forward.1} parent=11 // pred_fallthru
          _
        // Predicated region
        $region41: #{transformer_encoder_forward.1} parent=11 // pred_check
          %p362 = pneg %p216
        $region42: #{transformer_encoder_forward.1} parent=11 // pred_check_branch
          %364 = sbr.rel (%p362) target = $region44
        $region43: #{transformer_encoder_forward.1} parent=11 // pred_region
          _
        $region44: #{transformer_encoder_forward.1} parent=11 // pred_fallthru
          _
        // Predicated region
        $region45: #{transformer_encoder_forward.1} parent=11 // pred_check
          %p365 = pneg %p237
        $region46: #{transformer_encoder_forward.1} parent=11 // pred_check_branch
          %367 = sbr.rel (%p365) target = $region48
        $region47: #{transformer_encoder_forward.1} parent=11 // pred_region
          _
        $region48: #{transformer_encoder_forward.1} parent=11 // pred_fallthru
          _
        // Predicated region
        $region49: #{transformer_encoder_forward.1} parent=11 // pred_check
          %p368 = pneg %p258
        $region50: #{transformer_encoder_forward.1} parent=11 // pred_check_branch
          %370 = sbr.rel (%p368) target = $region52
        $region51: #{transformer_encoder_forward.1} parent=11 // pred_region
          _
        $region52: #{transformer_encoder_forward.1} parent=11 // pred_fallthru
          _
        // Predicated region
        $region53: #{transformer_encoder_forward.1} parent=11 // pred_check
          %p371 = pneg %p279
        $region54: #{transformer_encoder_forward.1} parent=11 // pred_check_branch
          %373 = sbr.rel (%p371) target = $region56
        $region55: #{transformer_encoder_forward.1} parent=11 // pred_region
          _
        $region56: #{transformer_encoder_forward.1} parent=11 // pred_fallthru
          _
        // Predicated region
        $region57: #{transformer_encoder_forward.1} parent=11 // pred_check
          %p374 = pneg %p300
        $region58: #{transformer_encoder_forward.1} parent=11 // pred_check_branch
          %376 = sbr.rel (%p374) target = $region60
        $region59: #{transformer_encoder_forward.1} parent=11 // pred_region
          _
        $region60: #{transformer_encoder_forward.1} parent=11 // pred_fallthru
          _
      $region12: #{transformer_encoder_forward.1} parent=5 // pred_fallthru
        _
      %p377 = scmp.lt.s32.totalorder %s22, 2
      // Predicated region
      $region61: #{transformer_encoder_forward.1} parent=5 // pred_check
        %p378 = pneg %p377
      $region62: #{transformer_encoder_forward.1} parent=5 // pred_check_branch
        %380 = sbr.rel (%p378) target = $region64
      $region63: #{transformer_encoder_forward.1} parent=5 // pred_region
        // Predicated region
        $region65: #{transformer_encoder_forward.1} parent=63 // pred_check
          %p381 = pneg %p42
        $region66: #{transformer_encoder_forward.1} parent=63 // pred_check_branch
          %383 = sbr.rel (%p381) target = $region68
        $region67: #{transformer_encoder_forward.1} parent=63 // pred_region
          %p384 = scmp.lt.s32.totalorder %s22, 1
          %s385 = scalar_select %p384, %s22, 1
          %s386 = smul.addr %s385, 2
          %s387 = smul.addr %s386, 4
          %s388 = scalar_lea.vmem %s0, %s387
        $region68: #{transformer_encoder_forward.1} parent=63 // pred_fallthru
          _
      $region64: #{transformer_encoder_forward.1} parent=5 // pred_fallthru
        _
      %p389 = scmp.le.s32.totalorder 1, %s22
      %p390 = scmp.lt.s32.totalorder %s22, 3
      %p391 = pnand %p389, %p390
      %p392 = pneg %p391
      // Predicated region
      $region69: #{transformer_encoder_forward.1} parent=5 // pred_check
        _
      $region70: #{transformer_encoder_forward.1} parent=5 // pred_check_branch
        %394 = sbr.rel (%p391) target = $region72
      $region71: #{transformer_encoder_forward.1} parent=5 // pred_region
        %s395 = ssub.s32 %s22, 1
        %p396 = scmp.lt.s32.totalorder %s27, 1
        %s397 = scalar_select %p396, %s27, 1
        %s398 = smul.addr %s397, 2
        %s399 = smul.addr %s398, 4
        %s400 = scalar_lea.vmem %s0, %s399
        %p401 = pneg %p48
        %p402 = pneg %p45
        %p403 = pneg %p69
        %p404 = pneg %p66
        %p405 = pneg %p90
        %p406 = pneg %p87
        %p407 = pneg %p111
        %p408 = pneg %p108
        %p409 = pneg %p132
        %p410 = pneg %p129
        %p411 = pneg %p153
        %p412 = pneg %p150
        %p413 = pneg %p174
        %p414 = pneg %p171
        %p415 = pneg %p195
        %p416 = pneg %p192
        %p417 = pneg %p216
        %p418 = pneg %p213
        %p419 = pneg %p237
        %p420 = pneg %p234
        %p421 = pneg %p258
        %p422 = pneg %p255
        %p423 = pneg %p279
        %p424 = pneg %p276
        %p425 = pneg %p300
        %p426 = pneg %p297
        %p427 = pneg %p326
        %p428 = pneg %p323
        %s429 = sand.u32 %s313, 1
        %s430 = scalar_lea.sflag [#allocation5], %s429
        %s431 = sand.u32 %s313, 1
        %s432 = smul.addr %s431, 4
        %s433 = scalar_lea.vmem [#allocation4], %s432
        %p434 = scmp.lt.s32.totalorder %s27, 1
        %s435 = scalar_select %p434, %s27, 1
        %s436 = smul.addr %s435, 2
        %s437 = smul.addr %s436, 4
        %s438 = scalar_lea.vmem %s0, %s437
        %v440 = vld [vmem:[%s438] sm:$0xf]
        %v441 = vld [vmem:[%s438 + $0x4] sm:$0x1]
        %v442 = vld [vmem:[%s1] sm:$0xf]
        %v443 = vld [vmem:[%s1 + $0x4] sm:$0xf]
        %v444 = vld [vmem:[%s1 + $0x8] sm:$0xf]
        %v445 = vld [vmem:[%s1 + $0xc] sm:$0xf]
        %s446 = scalar_lea.vmem %s1, 16
        %v447 = vld [vmem:[%s446] sm:$0xf]
        %v448 = vld [vmem:[%s446 + $0x4] sm:$0xf]
        %v449 = vld [vmem:[%s446 + $0x8] sm:$0xf]
        %v450 = vld [vmem:[%s446 + $0xc] sm:$0xf]
        %v453 = vunpack.c.l.b16 %v440
        %v454 = vunpack.c.l.b16 %v441
        %v455 = vpack.c.b16 %v454, %v453
        %v457 = vshrl.u32 %v455, 16
        %v459 = vshll.u32 %v455, 16
        %v461 = vrot.slane %v459, 1
        %v462 = vor.u32 %v457, %v461
        %v467 = vunpack.c.l.b16 %v447
        %v468 = vunpack.c.l.b16 %v448
        %v469 = vunpack.c.l.b16 %v449
        %v470 = vunpack.c.l.b16 %v450
        %v471 = vpack.c.b16 %v468, %v467
        %v472 = vpack.c.b16 %v470, %v469
        %vm475 = vcmask 261120
        %v477 = vsel %vm475, %v462, 0
        %479 = vmatprep.subr.bf16.mxu0 0
        %480 = vmatpush1.bf16.msra.mxu0 %v471
        %481 = vmatprep.subr.bf16.mxu0 0
        %482 = vmatpush1.bf16.msra.mxu0 %v472
        %483 = vmatprep.subr.bf16.mxu0 0
        %484 = vmatpush1.bf16.msra.mxu0 0
        %485 = vmatprep.subr.bf16.mxu0 0
        %486 = vmatpush1.bf16.msra.mxu0 0
        %487 = vmatprep.subr.bf16.mxu0 0
        %488 = vmatpush1.bf16.msra.mxu0 0
        %489 = vmatprep.subr.bf16.mxu0 0
        %490 = vmatpush1.bf16.msra.mxu0 0
        %491 = vmatprep.subr.bf16.mxu0 0
        %492 = vmatpush1.bf16.msra.mxu0 0
        %493 = vmatprep.subr.bf16.mxu0 0
        %494 = vmatpush1.bf16.msra.mxu0 0
        %495 = vmatprep.subr.bf16.mxu0 0
        %496 = vmatpush1.bf16.msra.mxu0 0
        %497 = vmatprep.subr.bf16.mxu0 0
        %498 = vmatpush1.bf16.msra.mxu0 0
        %499 = vmatprep.subr.bf16.mxu0 0
        %500 = vmatpush1.bf16.msra.mxu0 0
        %501 = vmatprep.subr.bf16.mxu0 0
        %502 = vmatpush1.bf16.msra.mxu0 0
        %503 = vmatprep.subr.bf16.mxu0 0
        %504 = vmatpush1.bf16.msra.mxu0 0
        %505 = vmatprep.subr.bf16.mxu0 0
        %506 = vmatpush1.bf16.msra.mxu0 0
        %507 = vmatprep.subr.bf16.mxu0 0
        %508 = vmatpush1.bf16.msra.mxu0 0
        %509 = vmatprep.subr.bf16.mxu0 0
        %510 = vmatpush1.bf16.msra.mxu0 0
        %511 = vmatprep.mubr.bf16.mxu0 0
        %512 = vmatmul.mubr.bf16.gmra.mrb[0].mxu0 %v477
        %v513 = vpop.f32.mrb[0].mxu0
        %v514 = vadd.f32 0.0, %v513
        %v515 = vpop.f32.mrb[0].mxu0
        %v516 = vpop.f32.mrb[0].mxu0
        %v517 = vpop.f32.mrb[0].mxu0
        %518 = vdwg.mxu0
        %v523 = vunpack.c.l.b16 %v442
        %v524 = vunpack.c.l.b16 %v443
        %v525 = vunpack.c.l.b16 %v444
        %v526 = vunpack.c.l.b16 %v445
        %v527 = vpack.c.b16 %v524, %v523
        %v528 = vpack.c.b16 %v526, %v525
        %v532 = vsel %vm475, %v440, 0
        %534 = vmatprep.subr.bf16.mxu0 0
        %535 = vmatpush1.bf16.msra.mxu0 %v527
        %536 = vmatprep.subr.bf16.mxu0 0
        %537 = vmatpush1.bf16.msra.mxu0 %v528
        %538 = vmatprep.subr.bf16.mxu0 0
        %539 = vmatpush1.bf16.msra.mxu0 0
        %540 = vmatprep.subr.bf16.mxu0 0
        %541 = vmatpush1.bf16.msra.mxu0 0
        %542 = vmatprep.subr.bf16.mxu0 0
        %543 = vmatpush1.bf16.msra.mxu0 0
        %544 = vmatprep.subr.bf16.mxu0 0
        %545 = vmatpush1.bf16.msra.mxu0 0
        %546 = vmatprep.subr.bf16.mxu0 0
        %547 = vmatpush1.bf16.msra.mxu0 0
        %548 = vmatprep.subr.bf16.mxu0 0
        %549 = vmatpush1.bf16.msra.mxu0 0
        %550 = vmatprep.subr.bf16.mxu0 0
        %551 = vmatpush1.bf16.msra.mxu0 0
        %552 = vmatprep.subr.bf16.mxu0 0
        %553 = vmatpush1.bf16.msra.mxu0 0
        %554 = vmatprep.subr.bf16.mxu0 0
        %555 = vmatpush1.bf16.msra.mxu0 0
        %556 = vmatprep.subr.bf16.mxu0 0
        %557 = vmatpush1.bf16.msra.mxu0 0
        %558 = vmatprep.subr.bf16.mxu0 0
        %559 = vmatpush1.bf16.msra.mxu0 0
        %560 = vmatprep.subr.bf16.mxu0 0
        %561 = vmatpush1.bf16.msra.mxu0 0
        %562 = vmatprep.subr.bf16.mxu0 0
        %563 = vmatpush1.bf16.msra.mxu0 0
        %564 = vmatprep.subr.bf16.mxu0 0
        %565 = vmatpush1.bf16.msra.mxu0 0
        %566 = vmatprep.mubr.bf16.mxu0 0
        %567 = vmatmul.mubr.bf16.gmra.mrb[0].mxu0 %v532
        %v568 = vpop.f32.mrb[0].mxu0
        %v569 = vadd.f32 %v514, %v568
        %v570 = vpop.f32.mrb[0].mxu0
        %v571 = vpop.f32.mrb[0].mxu0
        %v572 = vpop.f32.mrb[0].mxu0
        %573 = vdwg.mxu0
        %s574 = scalar_lea.vmem %s1, 32
        %v575 = vld [vmem:[%s574] sm:$0xf]
        %v576 = vld [vmem:[%s574 + $0x4] sm:$0xf]
        %v577 = vld [vmem:[%s574 + $0x8] sm:$0xf]
        %v578 = vld [vmem:[%s574 + $0xc] sm:$0xf]
        %v579 = vrot.slane %v455, 1
        %v584 = vunpack.c.l.b16 %v575
        %v585 = vunpack.c.l.b16 %v576
        %v586 = vunpack.c.l.b16 %v577
        %v587 = vunpack.c.l.b16 %v578
        %v588 = vpack.c.b16 %v585, %v584
        %v589 = vpack.c.b16 %v587, %v586
        %v593 = vsel %vm475, %v579, 0
        %595 = vmatprep.subr.bf16.mxu0 0
        %596 = vmatpush1.bf16.msra.mxu0 %v588
        %597 = vmatprep.subr.bf16.mxu0 0
        %598 = vmatpush1.bf16.msra.mxu0 %v589
        %599 = vmatprep.subr.bf16.mxu0 0
        %600 = vmatpush1.bf16.msra.mxu0 0
        %601 = vmatprep.subr.bf16.mxu0 0
        %602 = vmatpush1.bf16.msra.mxu0 0
        %603 = vmatprep.subr.bf16.mxu0 0
        %604 = vmatpush1.bf16.msra.mxu0 0
        %605 = vmatprep.subr.bf16.mxu0 0
        %606 = vmatpush1.bf16.msra.mxu0 0
        %607 = vmatprep.subr.bf16.mxu0 0
        %608 = vmatpush1.bf16.msra.mxu0 0
        %609 = vmatprep.subr.bf16.mxu0 0
        %610 = vmatpush1.bf16.msra.mxu0 0
        %611 = vmatprep.subr.bf16.mxu0 0
        %612 = vmatpush1.bf16.msra.mxu0 0
        %613 = vmatprep.subr.bf16.mxu0 0
        %614 = vmatpush1.bf16.msra.mxu0 0
        %615 = vmatprep.subr.bf16.mxu0 0
        %616 = vmatpush1.bf16.msra.mxu0 0
        %617 = vmatprep.subr.bf16.mxu0 0
        %618 = vmatpush1.bf16.msra.mxu0 0
        %619 = vmatprep.subr.bf16.mxu0 0
        %620 = vmatpush1.bf16.msra.mxu0 0
        %621 = vmatprep.subr.bf16.mxu0 0
        %622 = vmatpush1.bf16.msra.mxu0 0
        %623 = vmatprep.subr.bf16.mxu0 0
        %624 = vmatpush1.bf16.msra.mxu0 0
        %625 = vmatprep.subr.bf16.mxu0 0
        %626 = vmatpush1.bf16.msra.mxu0 0
        %627 = vmatprep.mubr.bf16.mxu0 0
        %628 = vmatmul.mubr.bf16.gmra.mrb[0].mxu0 %v593
        %v629 = vpop.f32.mrb[0].mxu0
        %v630 = vadd.f32 0.0, %v629
        %v631 = vpop.f32.mrb[0].mxu0
        %v632 = vpop.f32.mrb[0].mxu0
        %v633 = vpop.f32.mrb[0].mxu0
        %634 = vdwg.mxu0
        %v635 = vadd.f32 %v569, %v630
        %v636 = vld [vmem:[%s2] sm:$0x1]
        %v637 = vlaneseq
        %v638 = vshrl.u32 %v637, 7
        %v639 = vsub.s32 0, %v638
        %v640 = vrot.slane %v636, %v639
        %v641 = vadd.f32 %v635, %v640
        %vm642 = vcmp.ge.f32.partialorder %v641, 0.0
        %v643 = vmul.f32 %v641, 0.2
        %v644 = vsel %vm642, %v641, %v643
        %v645 = vld [vmem:[%s2 + $0x1] sm:$0x1]
        %v646 = vlaneseq
        %v647 = vshrl.u32 %v646, 7
        %v648 = vsub.s32 0, %v647
        %v649 = vrot.slane %v645, %v648
        %v650 = vmul.f32 %v644, %v649
        %v651 = vld [vmem:[%s2 + $0x2] sm:$0x1]
        %v652 = vlaneseq
        %v653 = vshrl.u32 %v652, 7
        %v654 = vsub.s32 0, %v653
        %v655 = vrot.slane %v651, %v654
        %v656 = vadd.f32 %v650, %v655
        %657 = vst.msk [vmem:[#allocation2 + $0x2] sm:$0xff] %vm475, %v656
        %vm658 = vcmask 253952
        %659 = vst.msk [vmem:[#allocation2] sm:$0x1] %vm658, %v656
        %660 = vst.msk [vmem:[#allocation2 + $0x1] sm:$0x1] %vm658, %v656
        %vm661 = vcmask 261127
        %662 = vst.msk [vmem:[#allocation2 + $0x3] sm:$0x80] %vm661, %v656
        %663 = vst.msk [vmem:[#allocation2 + $0x4] sm:$0x80] %vm661, %v656
        %v664 = vld [vmem:[#allocation2] sm:$0xff]
        %v665 = vpack.c.bf16 %v664, %v664
        %v666 = vld [vmem:[%s3] sm:$0xf]
        %v667 = vld [vmem:[%s3 + $0x4] sm:$0xf]
        %v668 = vld [vmem:[%s3 + $0x8] sm:$0xf]
        %v669 = vld [vmem:[%s3 + $0xc] sm:$0xf]
        %v670 = vld [vmem:[#allocation2 + $0x1] sm:$0xff]
        %v671 = vpack.c.bf16 %v670, %v670
        %s672 = scalar_lea.vmem %s3, 16
        %v673 = vld [vmem:[%s672] sm:$0xf]
        %v674 = vld [vmem:[%s672 + $0x4] sm:$0xf]
        %v675 = vld [vmem:[%s672 + $0x8] sm:$0xf]
        %v676 = vld [vmem:[%s672 + $0xc] sm:$0xf]
        %v681 = vunpack.c.l.b16 %v673
        %v682 = vunpack.c.l.b16 %v674
        %v683 = vunpack.c.l.b16 %v675
        %v684 = vunpack.c.l.b16 %v676
        %v685 = vpack.c.b16 %v682, %v681
        %v686 = vpack.c.b16 %v684, %v683
        %v690 = vsel %vm475, %v671, 0
        %692 = vmatprep.subr.bf16.mxu0 0
        %693 = vmatpush1.bf16.msra.mxu0 %v685
        %694 = vmatprep.subr.bf16.mxu0 0
        %695 = vmatpush1.bf16.msra.mxu0 %v686
        %696 = vmatprep.subr.bf16.mxu0 0
        %697 = vmatpush1.bf16.msra.mxu0 0
        %698 = vmatprep.subr.bf16.mxu0 0
        %699 = vmatpush1.bf16.msra.mxu0 0
        %700 = vmatprep.subr.bf16.mxu0 0
        %701 = vmatpush1.bf16.msra.mxu0 0
        %702 = vmatprep.subr.bf16.mxu0 0
        %703 = vmatpush1.bf16.msra.mxu0 0
        %704 = vmatprep.subr.bf16.mxu0 0
        %705 = vmatpush1.bf16.msra.mxu0 0
        %706 = vmatprep.subr.bf16.mxu0 0
        %707 = vmatpush1.bf16.msra.mxu0 0
        %708 = vmatprep.subr.bf16.mxu0 0
        %709 = vmatpush1.bf16.msra.mxu0 0
        %710 = vmatprep.subr.bf16.mxu0 0
        %711 = vmatpush1.bf16.msra.mxu0 0
        %712 = vmatprep.subr.bf16.mxu0 0
        %713 = vmatpush1.bf16.msra.mxu0 0
        %714 = vmatprep.subr.bf16.mxu0 0
        %715 = vmatpush1.bf16.msra.mxu0 0
        %716 = vmatprep.subr.bf16.mxu0 0
        %717 = vmatpush1.bf16.msra.mxu0 0
        %718 = vmatprep.subr.bf16.mxu0 0
        %719 = vmatpush1.bf16.msra.mxu0 0
        %720 = vmatprep.subr.bf16.mxu0 0
        %721 = vmatpush1.bf16.msra.mxu0 0
        %722 = vmatprep.subr.bf16.mxu0 0
        %723 = vmatpush1.bf16.msra.mxu0 0
        %724 = vmatprep.mubr.bf16.mxu0 0
        %725 = vmatmul.mubr.bf16.gmra.mrb[0].mxu0 %v690
        %v726 = vpop.f32.mrb[0].mxu0
        %v727 = vadd.f32 0.0, %v726
        %v728 = vpop.f32.mrb[0].mxu0
        %v729 = vpop.f32.mrb[0].mxu0
        %v730 = vpop.f32.mrb[0].mxu0
        %731 = vdwg.mxu0
        %v736 = vunpack.c.l.b16 %v666
        %v737 = vunpack.c.l.b16 %v667
        %v738 = vunpack.c.l.b16 %v668
        %v739 = vunpack.c.l.b16 %v669
        %v740 = vpack.c.b16 %v737, %v736
        %v741 = vpack.c.b16 %v739, %v738
        %v745 = vsel %vm475, %v665, 0
        %747 = vmatprep.subr.bf16.mxu0 0
        %748 = vmatpush1.bf16.msra.mxu0 %v740
        %749 = vmatprep.subr.bf16.mxu0 0
        %750 = vmatpush1.bf16.msra.mxu0 %v741
        %751 = vmatprep.subr.bf16.mxu0 0
        %752 = vmatpush1.bf16.msra.mxu0 0
        %753 = vmatprep.subr.bf16.mxu0 0
        %754 = vmatpush1.bf16.msra.mxu0 0
        %755 = vmatprep.subr.bf16.mxu0 0
        %756 = vmatpush1.bf16.msra.mxu0 0
        %757 = vmatprep.subr.bf16.mxu0 0
        %758 = vmatpush1.bf16.msra.mxu0 0
        %759 = vmatprep.subr.bf16.mxu0 0
        %760 = vmatpush1.bf16.msra.mxu0 0
        %761 = vmatprep.subr.bf16.mxu0 0
        %762 = vmatpush1.bf16.msra.mxu0 0
        %763 = vmatprep.subr.bf16.mxu0 0
        %764 = vmatpush1.bf16.msra.mxu0 0
        %765 = vmatprep.subr.bf16.mxu0 0
        %766 = vmatpush1.bf16.msra.mxu0 0
        %767 = vmatprep.subr.bf16.mxu0 0
        %768 = vmatpush1.bf16.msra.mxu0 0
        %769 = vmatprep.subr.bf16.mxu0 0
        %770 = vmatpush1.bf16.msra.mxu0 0
        %771 = vmatprep.subr.bf16.mxu0 0
        %772 = vmatpush1.bf16.msra.mxu0 0
        %773 = vmatprep.subr.bf16.mxu0 0
        %774 = vmatpush1.bf16.msra.mxu0 0
        %775 = vmatprep.subr.bf16.mxu0 0
        %776 = vmatpush1.bf16.msra.mxu0 0
        %777 = vmatprep.subr.bf16.mxu0 0
        %778 = vmatpush1.bf16.msra.mxu0 0
        %779 = vmatprep.mubr.bf16.mxu0 0
        %780 = vmatmul.mubr.bf16.gmra.mrb[0].mxu0 %v745
        %v781 = vpop.f32.mrb[0].mxu0
        %v782 = vadd.f32 %v727, %v781
        %v783 = vpop.f32.mrb[0].mxu0
        %v784 = vpop.f32.mrb[0].mxu0
        %v785 = vpop.f32.mrb[0].mxu0
        %786 = vdwg.mxu0
        %v787 = vld [vmem:[#allocation2 + $0x2] sm:$0xff]
        %v788 = vpack.c.bf16 %v787, %v787
        %s789 = scalar_lea.vmem %s3, 32
        %v790 = vld [vmem:[%s789] sm:$0xf]
        %v791 = vld [vmem:[%s789 + $0x4] sm:$0xf]
        %v792 = vld [vmem:[%s789 + $0x8] sm:$0xf]
        %v793 = vld [vmem:[%s789 + $0xc] sm:$0xf]
        %v798 = vunpack.c.l.b16 %v790
        %v799 = vunpack.c.l.b16 %v791
        %v800 = vunpack.c.l.b16 %v792
        %v801 = vunpack.c.l.b16 %v793
        %v802 = vpack.c.b16 %v799, %v798
        %v803 = vpack.c.b16 %v801, %v800
        %v807 = vsel %vm475, %v788, 0
        %809 = vmatprep.subr.bf16.mxu0 0
        %810 = vmatpush1.bf16.msra.mxu0 %v802
        %811 = vmatprep.subr.bf16.mxu0 0
        %812 = vmatpush1.bf16.msra.mxu0 %v803
        %813 = vmatprep.subr.bf16.mxu0 0
        %814 = vmatpush1.bf16.msra.mxu0 0
        %815 = vmatprep.subr.bf16.mxu0 0
        %816 = vmatpush1.bf16.msra.mxu0 0
        %817 = vmatprep.subr.bf16.mxu0 0
        %818 = vmatpush1.bf16.msra.mxu0 0
        %819 = vmatprep.subr.bf16.mxu0 0
        %820 = vmatpush1.bf16.msra.mxu0 0
        %821 = vmatprep.subr.bf16.mxu0 0
        %822 = vmatpush1.bf16.msra.mxu0 0
        %823 = vmatprep.subr.bf16.mxu0 0
        %824 = vmatpush1.bf16.msra.mxu0 0
        %825 = vmatprep.subr.bf16.mxu0 0
        %826 = vmatpush1.bf16.msra.mxu0 0
        %827 = vmatprep.subr.bf16.mxu0 0
        %828 = vmatpush1.bf16.msra.mxu0 0
        %829 = vmatprep.subr.bf16.mxu0 0
        %830 = vmatpush1.bf16.msra.mxu0 0
        %831 = vmatprep.subr.bf16.mxu0 0
        %832 = vmatpush1.bf16.msra.mxu0 0
        %833 = vmatprep.subr.bf16.mxu0 0
        %834 = vmatpush1.bf16.msra.mxu0 0
        %835 = vmatprep.subr.bf16.mxu0 0
        %836 = vmatpush1.bf16.msra.mxu0 0
        %837 = vmatprep.subr.bf16.mxu0 0
        %838 = vmatpush1.bf16.msra.mxu0 0
        %839 = vmatprep.subr.bf16.mxu0 0
        %840 = vmatpush1.bf16.msra.mxu0 0
        %841 = vmatprep.mubr.bf16.mxu0 0
        %842 = vmatmul.mubr.bf16.gmra.mrb[0].mxu0 %v807
        %v843 = vpop.f32.mrb[0].mxu0
        %v844 = vadd.f32 0.0, %v843
        %v845 = vpop.f32.mrb[0].mxu0
        %v846 = vpop.f32.mrb[0].mxu0
        %v847 = vpop.f32.mrb[0].mxu0
        %848 = vdwg.mxu0
        %v849 = vadd.f32 %v782, %v844
        %v850 = vld [vmem:[#allocation2 + $0x3] sm:$0xff]
        %v851 = vpack.c.bf16 %v850, %v850
        %s852 = scalar_lea.vmem %s3, 48
        %v853 = vld [vmem:[%s852] sm:$0xf]
        %v854 = vld [vmem:[%s852 + $0x4] sm:$0xf]
        %v855 = vld [vmem:[%s852 + $0x8] sm:$0xf]
        %v856 = vld [vmem:[%s852 + $0xc] sm:$0xf]
        %v861 = vunpack.c.l.b16 %v853
        %v862 = vunpack.c.l.b16 %v854
        %v863 = vunpack.c.l.b16 %v855
        %v864 = vunpack.c.l.b16 %v856
        %v865 = vpack.c.b16 %v862, %v861
        %v866 = vpack.c.b16 %v864, %v863
        %v870 = vsel %vm475, %v851, 0
        %872 = vmatprep.subr.bf16.mxu0 0
        %873 = vmatpush1.bf16.msra.mxu0 %v865
        %874 = vmatprep.subr.bf16.mxu0 0
        %875 = vmatpush1.bf16.msra.mxu0 %v866
        %876 = vmatprep.subr.bf16.mxu0 0
        %877 = vmatpush1.bf16.msra.mxu0 0
        %878 = vmatprep.subr.bf16.mxu0 0
        %879 = vmatpush1.bf16.msra.mxu0 0
        %880 = vmatprep.subr.bf16.mxu0 0
        %881 = vmatpush1.bf16.msra.mxu0 0
        %882 = vmatprep.subr.bf16.mxu0 0
        %883 = vmatpush1.bf16.msra.mxu0 0
        %884 = vmatprep.subr.bf16.mxu0 0
        %885 = vmatpush1.bf16.msra.mxu0 0
        %886 = vmatprep.subr.bf16.mxu0 0
        %887 = vmatpush1.bf16.msra.mxu0 0
        %888 = vmatprep.subr.bf16.mxu0 0
        %889 = vmatpush1.bf16.msra.mxu0 0
        %890 = vmatprep.subr.bf16.mxu0 0
        %891 = vmatpush1.bf16.msra.mxu0 0
        %892 = vmatprep.subr.bf16.mxu0 0
        %893 = vmatpush1.bf16.msra.mxu0 0
        %894 = vmatprep.subr.bf16.mxu0 0
        %895 = vmatpush1.bf16.msra.mxu0 0
        %896 = vmatprep.subr.bf16.mxu0 0
        %897 = vmatpush1.bf16.msra.mxu0 0
        %898 = vmatprep.subr.bf16.mxu0 0
        %899 = vmatpush1.bf16.msra.mxu0 0
        %900 = vmatprep.subr.bf16.mxu0 0
        %901 = vmatpush1.bf16.msra.mxu0 0
        %902 = vmatprep.subr.bf16.mxu0 0
        %903 = vmatpush1.bf16.msra.mxu0 0
        %904 = vmatprep.mubr.bf16.mxu0 0
        %905 = vmatmul.mubr.bf16.gmra.mrb[0].mxu0 %v870
        %v906 = vpop.f32.mrb[0].mxu0
        %v907 = vadd.f32 0.0, %v906
        %v908 = vpop.f32.mrb[0].mxu0
        %v909 = vpop.f32.mrb[0].mxu0
        %v910 = vpop.f32.mrb[0].mxu0
        %911 = vdwg.mxu0
        %v912 = vadd.f32 %v849, %v907
        %v913 = vld [vmem:[#allocation2 + $0x4] sm:$0xff]
        %v914 = vpack.c.bf16 %v913, %v913
        %s915 = scalar_lea.vmem %s3, 64
        %v916 = vld [vmem:[%s915] sm:$0xf]
        %v917 = vld [vmem:[%s915 + $0x4] sm:$0xf]
        %v918 = vld [vmem:[%s915 + $0x8] sm:$0xf]
        %v919 = vld [vmem:[%s915 + $0xc] sm:$0xf]
        %v924 = vunpack.c.l.b16 %v916
        %v925 = vunpack.c.l.b16 %v917
        %v926 = vunpack.c.l.b16 %v918
        %v927 = vunpack.c.l.b16 %v919
        %v928 = vpack.c.b16 %v925, %v924
        %v929 = vpack.c.b16 %v927, %v926
        %v933 = vsel %vm475, %v914, 0
        %935 = vmatprep.subr.bf16.mxu0 0
        %936 = vmatpush1.bf16.msra.mxu0 %v928
        %937 = vmatprep.subr.bf16.mxu0 0
        %938 = vmatpush1.bf16.msra.mxu0 %v929
        %939 = vmatprep.subr.bf16.mxu0 0
        %940 = vmatpush1.bf16.msra.mxu0 0
        %941 = vmatprep.subr.bf16.mxu0 0
        %942 = vmatpush1.bf16.msra.mxu0 0
        %943 = vmatprep.subr.bf16.mxu0 0
        %944 = vmatpush1.bf16.msra.mxu0 0
        %945 = vmatprep.subr.bf16.mxu0 0
        %946 = vmatpush1.bf16.msra.mxu0 0
        %947 = vmatprep.subr.bf16.mxu0 0
        %948 = vmatpush1.bf16.msra.mxu0 0
        %949 = vmatprep.subr.bf16.mxu0 0
        %950 = vmatpush1.bf16.msra.mxu0 0
        %951 = vmatprep.subr.bf16.mxu0 0
        %952 = vmatpush1.bf16.msra.mxu0 0
        %953 = vmatprep.subr.bf16.mxu0 0
        %954 = vmatpush1.bf16.msra.mxu0 0
        %955 = vmatprep.subr.bf16.mxu0 0
        %956 = vmatpush1.bf16.msra.mxu0 0
        %957 = vmatprep.subr.bf16.mxu0 0
        %958 = vmatpush1.bf16.msra.mxu0 0
        %959 = vmatprep.subr.bf16.mxu0 0
        %960 = vmatpush1.bf16.msra.mxu0 0
        %961 = vmatprep.subr.bf16.mxu0 0
        %962 = vmatpush1.bf16.msra.mxu0 0
        %963 = vmatprep.subr.bf16.mxu0 0
        %964 = vmatpush1.bf16.msra.mxu0 0
        %965 = vmatprep.subr.bf16.mxu0 0
        %966 = vmatpush1.bf16.msra.mxu0 0
        %967 = vmatprep.mubr.bf16.mxu0 0
        %968 = vmatmul.mubr.bf16.gmra.mrb[0].mxu0 %v933
        %v969 = vpop.f32.mrb[0].mxu0
        %v970 = vadd.f32 0.0, %v969
        %v971 = vpop.f32.mrb[0].mxu0
        %v972 = vpop.f32.mrb[0].mxu0
        %v973 = vpop.f32.mrb[0].mxu0
        %974 = vdwg.mxu0
        %v975 = vadd.f32 %v912, %v970
        %v976 = vld [vmem:[%s4] sm:$0x1]
        %v977 = vlaneseq
        %v978 = vshrl.u32 %v977, 7
        %v979 = vsub.s32 0, %v978
        %v980 = vrot.slane %v976, %v979
        %v981 = vadd.f32 %v975, %v980
        %vm982 = vcmp.ge.f32.partialorder %v981, 0.0
        %v983 = vmul.f32 %v981, 0.2
        %v984 = vsel %vm982, %v981, %v983
        %v985 = vld [vmem:[%s4 + $0x1] sm:$0x1]
        %v986 = vlaneseq
        %v987 = vshrl.u32 %v986, 7
        %v988 = vsub.s32 0, %v987
        %v989 = vrot.slane %v985, %v988
        %v990 = vmul.f32 %v984, %v989
        %v991 = vld [vmem:[%s4 + $0x2] sm:$0x1]
        %v992 = vlaneseq
        %v993 = vshrl.u32 %v992, 7
        %v994 = vsub.s32 0, %v993
        %v995 = vrot.slane %v991, %v994
        %v996 = vadd.f32 %v990, %v995
        %997 = vst.msk [vmem:[#allocation3] sm:$0xff] %vm475, %v996
        %v998 = vld [vmem:[#allocation3] ss:$2 sm:$0xf]
        %s999 = scalar_lea.vmem [#allocation3], 1
        %v1000 = vld [vmem:[%s999] ss:$2 sm:$0xf]
        %v1001 = vmax.f32 %v998, %v1000
        %v1002 = vpack.c.bf16 %v1001, %v1001
        %v1003 = vld [vmem:[%s5] sm:$0xf]
        %v1004 = vld [vmem:[%s5 + $0x4] sm:$0xf]
        %v1005 = vld [vmem:[%s5 + $0x8] sm:$0xf]
        %v1006 = vld [vmem:[%s5 + $0xc] sm:$0xf]
        %v1007 = vld [vmem:[%s2 + $0x3] sm:$0x1]
        %v1008 = vlaneseq
        %v1009 = vshrl.u32 %v1008, 7
        %v1010 = vsub.s32 0, %v1009
        %v1011 = vrot.slane %v1007, %v1010
        %v1016 = vunpack.c.l.b16 %v1003
        %v1017 = vunpack.c.l.b16 %v1004
        %v1018 = vunpack.c.l.b16 %v1005
        %v1019 = vunpack.c.l.b16 %v1006
        %v1020 = vpack.c.b16 %v1017, %v1016
        %v1021 = vpack.c.b16 %v1019, %v1018
        %v1025 = vsel %vm475, %v1002, 0
        %1027 = vmatprep.subr.bf16.mxu0 0
        %1028 = vmatpush1.bf16.msra.mxu0 %v1020
        %1029 = vmatprep.subr.bf16.mxu0 0
        %1030 = vmatpush1.bf16.msra.mxu0 %v1021
        %1031 = vmatprep.subr.bf16.mxu0 0
        %1032 = vmatpush1.bf16.msra.mxu0 0
        %1033 = vmatprep.subr.bf16.mxu0 0
        %1034 = vmatpush1.bf16.msra.mxu0 0
        %1035 = vmatprep.subr.bf16.mxu0 0
        %1036 = vmatpush1.bf16.msra.mxu0 0
        %1037 = vmatprep.subr.bf16.mxu0 0
        %1038 = vmatpush1.bf16.msra.mxu0 0
        %1039 = vmatprep.subr.bf16.mxu0 0
        %1040 = vmatpush1.bf16.msra.mxu0 0
        %1041 = vmatprep.subr.bf16.mxu0 0
        %1042 = vmatpush1.bf16.msra.mxu0 0
        %1043 = vmatprep.subr.bf16.mxu0 0
        %1044 = vmatpush1.bf16.msra.mxu0 0
        %1045 = vmatprep.subr.bf16.mxu0 0
        %1046 = vmatpush1.bf16.msra.mxu0 0
        %1047 = vmatprep.subr.bf16.mxu0 0
        %1048 = vmatpush1.bf16.msra.mxu0 0
        %1049 = vmatprep.subr.bf16.mxu0 0
        %1050 = vmatpush1.bf16.msra.mxu0 0
        %1051 = vmatprep.subr.bf16.mxu0 0
        %1052 = vmatpush1.bf16.msra.mxu0 0
        %1053 = vmatprep.subr.bf16.mxu0 0
        %1054 = vmatpush1.bf16.msra.mxu0 0
        %1055 = vmatprep.subr.bf16.mxu0 0
        %1056 = vmatpush1.bf16.msra.mxu0 0
        %1057 = vmatprep.subr.bf16.mxu0 0
        %1058 = vmatpush1.bf16.msra.mxu0 0
        %1059 = vmatprep.mubr.bf16.mxu0 0
        %1060 = vmatmul.mubr.bf16.gmra.mrb[0].mxu0 %v1025
        %v1061 = vpop.f32.mrb[0].mxu0
        %v1062 = vadd.f32 %v1011, %v1061
        %v1063 = vpop.f32.mrb[0].mxu0
        %v1064 = vpop.f32.mrb[0].mxu0
        %v1065 = vpop.f32.mrb[0].mxu0
        %1066 = vdwg.mxu0
        %v1067 = vpack.c.bf16 %v1062, %v1062
        %v1068 = vld [vmem:[%s6] sm:$0xf]
        %v1069 = vld [vmem:[%s6 + $0x4] sm:$0xf]
        %v1070 = vld [vmem:[%s6 + $0x8] sm:$0xf]
        %v1071 = vld [vmem:[%s6 + $0xc] sm:$0xf]
        %v1072 = vld [vmem:[%s10] sm:$0x1]
        %v1074 = vlaneseq
        %v1075 = vshrl.u32 %v1074, 7
        %v1076 = vsub.s32 0, %v1075
        %v1077 = vrot.slane %v1072, %v1076
        %v1083 = vunpack.c.l.b16 %v1068
        %v1084 = vunpack.c.l.b16 %v1069
        %v1085 = vunpack.c.l.b16 %v1070
        %v1086 = vunpack.c.l.b16 %v1071
        %v1087 = vpack.c.b16 %v1084, %v1083
        %v1088 = vpack.c.b16 %v1086, %v1085
        %v1092 = vsel %vm475, %v1067, 0
        %1094 = vmatprep.subr.bf16.mxu0 0
        %1095 = vmatpush1.bf16.msra.mxu0 %v1087
        %1096 = vmatprep.subr.bf16.mxu0 0
        %1097 = vmatpush1.bf16.msra.mxu0 %v1088
        %1098 = vmatprep.subr.bf16.mxu0 0
        %1099 = vmatpush1.bf16.msra.mxu0 0
        %1100 = vmatprep.subr.bf16.mxu0 0
        %1101 = vmatpush1.bf16.msra.mxu0 0
        %1102 = vmatprep.subr.bf16.mxu0 0
        %1103 = vmatpush1.bf16.msra.mxu0 0
        %1104 = vmatprep.subr.bf16.mxu0 0
        %1105 = vmatpush1.bf16.msra.mxu0 0
        %1106 = vmatprep.subr.bf16.mxu0 0
        %1107 = vmatpush1.bf16.msra.mxu0 0
        %1108 = vmatprep.subr.bf16.mxu0 0
        %1109 = vmatpush1.bf16.msra.mxu0 0
        %1110 = vmatprep.subr.bf16.mxu0 0
        %1111 = vmatpush1.bf16.msra.mxu0 0
        %1112 = vmatprep.subr.bf16.mxu0 0
        %1113 = vmatpush1.bf16.msra.mxu0 0
        %1114 = vmatprep.subr.bf16.mxu0 0
        %1115 = vmatpush1.bf16.msra.mxu0 0
        %1116 = vmatprep.subr.bf16.mxu0 0
        %1117 = vmatpush1.bf16.msra.mxu0 0
        %1118 = vmatprep.subr.bf16.mxu0 0
        %1119 = vmatpush1.bf16.msra.mxu0 0
        %1120 = vmatprep.subr.bf16.mxu0 0
        %1121 = vmatpush1.bf16.msra.mxu0 0
        %1122 = vmatprep.subr.bf16.mxu0 0
        %1123 = vmatpush1.bf16.msra.mxu0 0
        %1124 = vmatprep.subr.bf16.mxu0 0
        %1125 = vmatpush1.bf16.msra.mxu0 0
        %1126 = vmatprep.mubr.bf16.mxu0 0
        %1127 = vmatmul.mubr.bf16.gmra.mrb[0].mxu0 %v1092
        %v1128 = vpop.f32.mrb[0].mxu0
        %v1129 = vadd.f32 %v1077, %v1128
        %v1130 = vpop.f32.mrb[0].mxu0
        %v1131 = vpop.f32.mrb[0].mxu0
        %v1132 = vpop.f32.mrb[0].mxu0
        %1133 = vdwg.mxu0
        %v1134 = vpack.c.bf16 %v1129, %v1129
        %1136 = vrot.lane.b32.xlu0 %v1134, 96
        %v1137 = vpop.permute.xlu0 %1136
        %vm1138 = vcmask 130048
        %v1140 = vsel %vm1138, %v1134, 0
        %v1143 = vsel %vm1138, %v1137, 0
        %1145 = vmatprep.subr.bf16.mxu0 0
        %1146 = vmatpush1.bf16.xpose.msra.mxu0 %v1143
        %1147 = vmatprep.subr.bf16.mxu0 0
        %1148 = vmatpush1.bf16.xpose.msra.mxu0 0
        %1149 = vmatprep.subr.bf16.mxu0 0
        %1150 = vmatpush1.bf16.xpose.msra.mxu0 0
        %1151 = vmatprep.subr.bf16.mxu0 0
        %1152 = vmatpush1.bf16.xpose.msra.mxu0 0
        %1153 = vmatprep.subr.bf16.mxu0 0
        %1154 = vmatpush1.bf16.xpose.msra.mxu0 0
        %1155 = vmatprep.subr.bf16.mxu0 0
        %1156 = vmatpush1.bf16.xpose.msra.mxu0 0
        %1157 = vmatprep.subr.bf16.mxu0 0
        %1158 = vmatpush1.bf16.xpose.msra.mxu0 0
        %1159 = vmatprep.subr.bf16.mxu0 0
        %1160 = vmatpush1.bf16.xpose.msra.mxu0 0
        %1161 = vmatprep.subr.bf16.mxu0 0
        %1162 = vmatpush1.bf16.xpose.msra.mxu0 0
        %1163 = vmatprep.subr.bf16.mxu0 0
        %1164 = vmatpush1.bf16.xpose.msra.mxu0 0
        %1165 = vmatprep.subr.bf16.mxu0 0
        %1166 = vmatpush1.bf16.xpose.msra.mxu0 0
        %1167 = vmatprep.subr.bf16.mxu0 0
        %1168 = vmatpush1.bf16.xpose.msra.mxu0 0
        %1169 = vmatprep.subr.bf16.mxu0 0
        %1170 = vmatpush1.bf16.xpose.msra.mxu0 0
        %1171 = vmatprep.subr.bf16.mxu0 0
        %1172 = vmatpush1.bf16.xpose.msra.mxu0 0
        %1173 = vmatprep.subr.bf16.mxu0 0
        %1174 = vmatpush1.bf16.xpose.msra.mxu0 0
        %1175 = vmatprep.subr.bf16.mxu0 0
        %1176 = vmatpush1.bf16.xpose.msra.mxu0 0
        %1177 = vmatprep.mubr.bf16.mxu0 0
        %1178 = vmatmul.mubr.bf16.gmra.mrb[0].mxu0 %v1140
        %v1179 = vpop.f32.mrb[0].mxu0
        %v1180 = vadd.f32 0.0, %v1179
        %v1181 = vpop.f32.mrb[0].mxu0
        %v1182 = vpop.f32.mrb[0].mxu0
        %v1183 = vpop.f32.mrb[0].mxu0
        %1184 = vdwg.mxu0
        %vm1185 = vcmask 27648
        %v1186 = vsel %vm1185, %v1180, -inf
        %1187 = vmax.xlane.f32.xlu0 %v1186
        %v1188 = vpop.xlane.xlu0 %1187
        %v1189 = vsub.f32 %v1180, %v1188
        %v1190 = vmul.f32 %v1189, 1.442695
        %v1191 = vpow.pop %v1190
        %v1192 = vsel %vm1185, %v1191, 0.0
        %1193 = vadd.xlane.f32.xlu0 %v1192
        %v1194 = vpop.xlane.xlu0 %1193
        %v1195 = vrcp.pop %v1194
        %v1196 = vmul.f32 %v1191, %v1195
        %v1197 = vpack.c.bf16 %v1196, %v1196
        %1198 = vrot.lane.b32.xlu0 %v1134, 64
        %v1199 = vpop.permute.xlu0 %1198
        %vm1200 = vcmask 31744
        %v1202 = vsel %vm1200, %v1197, 0
        %vm1204 = vcmask 1041408
        %v1206 = vsel %vm1204, %v1199, 0
        %1208 = vmatprep.subr.bf16.mxu0 0
        %1209 = vmatpush1.bf16.msra.mxu0 %v1206
        %1210 = vmatprep.subr.bf16.mxu0 0
        %1211 = vmatpush1.bf16.msra.mxu0 0
        %1212 = vmatprep.subr.bf16.mxu0 0
        %1213 = vmatpush1.bf16.msra.mxu0 0
        %1214 = vmatprep.subr.bf16.mxu0 0
        %1215 = vmatpush1.bf16.msra.mxu0 0
        %1216 = vmatprep.subr.bf16.mxu0 0
        %1217 = vmatpush1.bf16.msra.mxu0 0
        %1218 = vmatprep.subr.bf16.mxu0 0
        %1219 = vmatpush1.bf16.msra.mxu0 0
        %1220 = vmatprep.subr.bf16.mxu0 0
        %1221 = vmatpush1.bf16.msra.mxu0 0
        %1222 = vmatprep.subr.bf16.mxu0 0
        %1223 = vmatpush1.bf16.msra.mxu0 0
        %1224 = vmatprep.subr.bf16.mxu0 0
        %1225 = vmatpush1.bf16.msra.mxu0 0
        %1226 = vmatprep.subr.bf16.mxu0 0
        %1227 = vmatpush1.bf16.msra.mxu0 0
        %1228 = vmatprep.subr.bf16.mxu0 0
        %1229 = vmatpush1.bf16.msra.mxu0 0
        %1230 = vmatprep.subr.bf16.mxu0 0
        %1231 = vmatpush1.bf16.msra.mxu0 0
        %1232 = vmatprep.subr.bf16.mxu0 0
        %1233 = vmatpush1.bf16.msra.mxu0 0
        %1234 = vmatprep.subr.bf16.mxu0 0
        %1235 = vmatpush1.bf16.msra.mxu0 0
        %1236 = vmatprep.subr.bf16.mxu0 0
        %1237 = vmatpush1.bf16.msra.mxu0 0
        %1238 = vmatprep.subr.bf16.mxu0 0
        %1239 = vmatpush1.bf16.msra.mxu0 0
        %1240 = vmatprep.mubr.bf16.mxu0 0
        %1241 = vmatmul.mubr.bf16.gmra.mrb[0].mxu0 %v1202
        %v1242 = vpop.f32.mrb[0].mxu0
        %v1243 = vadd.f32 0.0, %v1242
        %v1244 = vpop.f32.mrb[0].mxu0
        %v1245 = vpop.f32.mrb[0].mxu0
        %v1246 = vpop.f32.mrb[0].mxu0
        %1247 = vdwg.mxu0
        %1248 = vrot.lane.b32.xlu0 %v1134, 112
        %v1249 = vpop.permute.xlu0 %1248
        %1250 = vrot.lane.b32.xlu0 %v1134, 80
        %v1251 = vpop.permute.xlu0 %1250
        %v1253 = vsel %vm1138, %v1249, 0
        %v1256 = vsel %vm1138, %v1251, 0
        %1258 = vmatprep.subr.bf16.mxu0 0
        %1259 = vmatpush1.bf16.xpose.msra.mxu0 %v1256
        %1260 = vmatprep.subr.bf16.mxu0 0
        %1261 = vmatpush1.bf16.xpose.msra.mxu0 0
        %1262 = vmatprep.subr.bf16.mxu0 0
        %1263 = vmatpush1.bf16.xpose.msra.mxu0 0
        %1264 = vmatprep.subr.bf16.mxu0 0
        %1265 = vmatpush1.bf16.xpose.msra.mxu0 0
        %1266 = vmatprep.subr.bf16.mxu0 0
        %1267 = vmatpush1.bf16.xpose.msra.mxu0 0
        %1268 = vmatprep.subr.bf16.mxu0 0
        %1269 = vmatpush1.bf16.xpose.msra.mxu0 0
        %1270 = vmatprep.subr.bf16.mxu0 0
        %1271 = vmatpush1.bf16.xpose.msra.mxu0 0
        %1272 = vmatprep.subr.bf16.mxu0 0
        %1273 = vmatpush1.bf16.xpose.msra.mxu0 0
        %1274 = vmatprep.subr.bf16.mxu0 0
        %1275 = vmatpush1.bf16.xpose.msra.mxu0 0
        %1276 = vmatprep.subr.bf16.mxu0 0
        %1277 = vmatpush1.bf16.xpose.msra.mxu0 0
        %1278 = vmatprep.subr.bf16.mxu0 0
        %1279 = vmatpush1.bf16.xpose.msra.mxu0 0
        %1280 = vmatprep.subr.bf16.mxu0 0
        %1281 = vmatpush1.bf16.xpose.msra.mxu0 0
        %1282 = vmatprep.subr.bf16.mxu0 0
        %1283 = vmatpush1.bf16.xpose.msra.mxu0 0
        %1284 = vmatprep.subr.bf16.mxu0 0
        %1285 = vmatpush1.bf16.xpose.msra.mxu0 0
        %1286 = vmatprep.subr.bf16.mxu0 0
        %1287 = vmatpush1.bf16.xpose.msra.mxu0 0
        %1288 = vmatprep.subr.bf16.mxu0 0
        %1289 = vmatpush1.bf16.xpose.msra.mxu0 0
        %1290 = vmatprep.mubr.bf16.mxu0 0
        %1291 = vmatmul.mubr.bf16.gmra.mrb[0].mxu0 %v1253
        %v1292 = vpop.f32.mrb[0].mxu0
        %v1293 = vadd.f32 0.0, %v1292
        %v1294 = vpop.f32.mrb[0].mxu0
        %v1295 = vpop.f32.mrb[0].mxu0
        %v1296 = vpop.f32.mrb[0].mxu0
        %1297 = vdwg.mxu0
        %v1298 = vsel %vm1185, %v1293, -inf
        %1299 = vmax.xlane.f32.xlu0 %v1298
        %v1300 = vpop.xlane.xlu0 %1299
        %v1301 = vsub.f32 %v1293, %v1300
        %v1302 = vmul.f32 %v1301, 1.442695
        %v1303 = vpow.pop %v1302
        %v1304 = vsel %vm1185, %v1303, 0.0
        %1305 = vadd.xlane.f32.xlu0 %v1304
        %v1306 = vpop.xlane.xlu0 %1305
        %v1307 = vrcp.pop %v1306
        %v1308 = vmul.f32 %v1303, %v1307
        %v1309 = vpack.c.bf16 %v1308, %v1308
        %1310 = vrot.lane.b32.xlu0 %v1134, 48
        %v1311 = vpop.permute.xlu0 %1310
        %v1313 = vsel %vm1200, %v1309, 0
        %v1316 = vsel %vm1204, %v1311, 0
        %1318 = vmatprep.subr.bf16.mxu0 0
        %1319 = vmatpush1.bf16.msra.mxu0 %v1316
        %1320 = vmatprep.subr.bf16.mxu0 0
        %1321 = vmatpush1.bf16.msra.mxu0 0
        %1322 = vmatprep.subr.bf16.mxu0 0
        %1323 = vmatpush1.bf16.msra.mxu0 0
        %1324 = vmatprep.subr.bf16.mxu0 0
        %1325 = vmatpush1.bf16.msra.mxu0 0
        %1326 = vmatprep.subr.bf16.mxu0 0
        %1327 = vmatpush1.bf16.msra.mxu0 0
        %1328 = vmatprep.subr.bf16.mxu0 0
        %1329 = vmatpush1.bf16.msra.mxu0 0
        %1330 = vmatprep.subr.bf16.mxu0 0
        %1331 = vmatpush1.bf16.msra.mxu0 0
        %1332 = vmatprep.subr.bf16.mxu0 0
        %1333 = vmatpush1.bf16.msra.mxu0 0
        %1334 = vmatprep.subr.bf16.mxu0 0
        %1335 = vmatpush1.bf16.msra.mxu0 0
        %1336 = vmatprep.subr.bf16.mxu0 0
        %1337 = vmatpush1.bf16.msra.mxu0 0
        %1338 = vmatprep.subr.bf16.mxu0 0
        %1339 = vmatpush1.bf16.msra.mxu0 0
        %1340 = vmatprep.subr.bf16.mxu0 0
        %1341 = vmatpush1.bf16.msra.mxu0 0
        %1342 = vmatprep.subr.bf16.mxu0 0
        %1343 = vmatpush1.bf16.msra.mxu0 0
        %1344 = vmatprep.subr.bf16.mxu0 0
        %1345 = vmatpush1.bf16.msra.mxu0 0
        %1346 = vmatprep.subr.bf16.mxu0 0
        %1347 = vmatpush1.bf16.msra.mxu0 0
        %1348 = vmatprep.subr.bf16.mxu0 0
        %1349 = vmatpush1.bf16.msra.mxu0 0
        %1350 = vmatprep.mubr.bf16.mxu0 0
        %1351 = vmatmul.mubr.bf16.gmra.mrb[0].mxu0 %v1313
        %v1352 = vpop.f32.mrb[0].mxu0
        %v1353 = vadd.f32 0.0, %v1352
        %v1354 = vpop.f32.mrb[0].mxu0
        %v1355 = vpop.f32.mrb[0].mxu0
        %v1356 = vpop.f32.mrb[0].mxu0
        %1357 = vdwg.mxu0
        %1359 = vrot.lane.b32.xlu0 %v1353, 16
        %v1360 = vpop.permute.xlu0 %1359
        %v1362 = vsel %vm1138, %v1243, %v1360
        %v1363 = vpack.c.bf16 %v1362, %v1362
        %v1364 = vld [vmem:[%s7] sm:$0xf]
        %v1365 = vld [vmem:[%s7 + $0x4] sm:$0xf]
        %v1366 = vld [vmem:[%s7 + $0x8] sm:$0xf]
        %v1367 = vld [vmem:[%s7 + $0xc] sm:$0xf]
        %v1368 = vld [vmem:[%s12] sm:$0x1]
        %v1369 = vlaneseq
        %v1370 = vshrl.u32 %v1369, 7
        %v1371 = vsub.s32 0, %v1370
        %v1372 = vrot.slane %v1368, %v1371
        %v1377 = vunpack.c.l.b16 %v1364
        %v1378 = vunpack.c.l.b16 %v1365
        %v1379 = vunpack.c.l.b16 %v1366
        %v1380 = vunpack.c.l.b16 %v1367
        %v1381 = vpack.c.b16 %v1378, %v1377
        %v1382 = vpack.c.b16 %v1380, %v1379
        %v1386 = vsel %vm475, %v1363, 0
        %1388 = vmatprep.subr.bf16.mxu0 0
        %1389 = vmatpush1.bf16.msra.mxu0 %v1381
        %1390 = vmatprep.subr.bf16.mxu0 0
        %1391 = vmatpush1.bf16.msra.mxu0 %v1382
        %1392 = vmatprep.subr.bf16.mxu0 0
        %1393 = vmatpush1.bf16.msra.mxu0 0
        %1394 = vmatprep.subr.bf16.mxu0 0
        %1395 = vmatpush1.bf16.msra.mxu0 0
        %1396 = vmatprep.subr.bf16.mxu0 0
        %1397 = vmatpush1.bf16.msra.mxu0 0
        %1398 = vmatprep.subr.bf16.mxu0 0
        %1399 = vmatpush1.bf16.msra.mxu0 0
        %1400 = vmatprep.subr.bf16.mxu0 0
        %1401 = vmatpush1.bf16.msra.mxu0 0
        %1402 = vmatprep.subr.bf16.mxu0 0
        %1403 = vmatpush1.bf16.msra.mxu0 0
        %1404 = vmatprep.subr.bf16.mxu0 0
        %1405 = vmatpush1.bf16.msra.mxu0 0
        %1406 = vmatprep.subr.bf16.mxu0 0
        %1407 = vmatpush1.bf16.msra.mxu0 0
        %1408 = vmatprep.subr.bf16.mxu0 0
        %1409 = vmatpush1.bf16.msra.mxu0 0
        %1410 = vmatprep.subr.bf16.mxu0 0
        %1411 = vmatpush1.bf16.msra.mxu0 0
        %1412 = vmatprep.subr.bf16.mxu0 0
        %1413 = vmatpush1.bf16.msra.mxu0 0
        %1414 = vmatprep.subr.bf16.mxu0 0
        %1415 = vmatpush1.bf16.msra.mxu0 0
        %1416 = vmatprep.subr.bf16.mxu0 0
        %1417 = vmatpush1.bf16.msra.mxu0 0
        %1418 = vmatprep.subr.bf16.mxu0 0
        %1419 = vmatpush1.bf16.msra.mxu0 0
        %1420 = vmatprep.mubr.bf16.mxu0 0
        %1421 = vmatmul.mubr.bf16.gmra.mrb[0].mxu0 %v1386
        %v1422 = vpop.f32.mrb[0].mxu0
        %v1423 = vadd.f32 %v1372, %v1422
        %v1424 = vpop.f32.mrb[0].mxu0
        %v1425 = vpop.f32.mrb[0].mxu0
        %v1426 = vpop.f32.mrb[0].mxu0
        %1427 = vdwg.mxu0
        %v1428 = vadd.f32 %v1062, %v1423
        %v1429 = vld [vmem:[%s12 + $0x1] sm:$0x1]
        %v1430 = vld [vmem:[%s12 + $0x2] sm:$0x1]
        %vm1431 = vcmask 257024
        %v1432 = vsel %vm1431, %v1428, 0.0
        %1433 = vadd.xlane.f32.xlu0 %v1432
        %v1434 = vpop.xlane.xlu0 %1433
        %v1435 = vrcp.pop 32.0
        %v1436 = vmul.f32 %v1434, %v1435
        %v1437 = vsub.f32 %v1428, %v1436
        %v1438 = vmul.f32 %v1437, %v1437
        %v1439 = vsel %vm1431, %v1438, 0.0
        %1440 = vadd.xlane.f32.xlu0 %v1439
        %v1441 = vpop.xlane.xlu0 %1440
        %v1442 = vmul.f32 %v1441, %v1435
        %v1443 = vadd.f32 %v1442, 1e-05
        %v1444 = vrsqrt.pop %v1443
        %v1445 = vmul.f32 %v1437, %v1444
        %v1446 = vlaneseq
        %v1447 = vshrl.u32 %v1446, 7
        %v1448 = vsub.s32 0, %v1447
        %v1449 = vrot.slane %v1429, %v1448
        %v1450 = vmul.f32 %v1445, %v1449
        %v1451 = vlaneseq
        %v1452 = vshrl.u32 %v1451, 7
        %v1453 = vsub.s32 0, %v1452
        %v1454 = vrot.slane %v1430, %v1453
        %v1455 = vadd.f32 %v1450, %v1454
        %v1456 = vpack.c.bf16 %v1455, %v1455
        %v1457 = vld [vmem:[%s8] sm:$0xf]
        %v1458 = vld [vmem:[%s8 + $0x4] sm:$0xf]
        %v1459 = vld [vmem:[%s8 + $0x8] sm:$0xf]
        %v1460 = vld [vmem:[%s8 + $0xc] sm:$0xf]
        %v1461 = vld [vmem:[%s11] sm:$0x1]
        %v1463 = vlaneseq
        %v1464 = vshrl.u32 %v1463, 7
        %v1465 = vsub.s32 0, %v1464
        %v1466 = vrot.slane %v1461, %v1465
        %v1472 = vunpack.c.l.b16 %v1457
        %v1473 = vunpack.c.l.b16 %v1458
        %v1474 = vunpack.c.l.b16 %v1459
        %v1475 = vunpack.c.l.b16 %v1460
        %v1476 = vpack.c.b16 %v1473, %v1472
        %v1477 = vpack.c.b16 %v1475, %v1474
        %v1481 = vsel %vm475, %v1456, 0
        %1483 = vmatprep.subr.bf16.mxu0 0
        %1484 = vmatpush1.bf16.msra.mxu0 %v1476
        %1485 = vmatprep.subr.bf16.mxu0 0
        %1486 = vmatpush1.bf16.msra.mxu0 %v1477
        %1487 = vmatprep.subr.bf16.mxu0 0
        %1488 = vmatpush1.bf16.msra.mxu0 0
        %1489 = vmatprep.subr.bf16.mxu0 0
        %1490 = vmatpush1.bf16.msra.mxu0 0
        %1491 = vmatprep.subr.bf16.mxu0 0
        %1492 = vmatpush1.bf16.msra.mxu0 0
        %1493 = vmatprep.subr.bf16.mxu0 0
        %1494 = vmatpush1.bf16.msra.mxu0 0
        %1495 = vmatprep.subr.bf16.mxu0 0
        %1496 = vmatpush1.bf16.msra.mxu0 0
        %1497 = vmatprep.subr.bf16.mxu0 0
        %1498 = vmatpush1.bf16.msra.mxu0 0
        %1499 = vmatprep.subr.bf16.mxu0 0
        %1500 = vmatpush1.bf16.msra.mxu0 0
        %1501 = vmatprep.subr.bf16.mxu0 0
        %1502 = vmatpush1.bf16.msra.mxu0 0
        %1503 = vmatprep.subr.bf16.mxu0 0
        %1504 = vmatpush1.bf16.msra.mxu0 0
        %1505 = vmatprep.subr.bf16.mxu0 0
        %1506 = vmatpush1.bf16.msra.mxu0 0
        %1507 = vmatprep.subr.bf16.mxu0 0
        %1508 = vmatpush1.bf16.msra.mxu0 0
        %1509 = vmatprep.subr.bf16.mxu0 0
        %1510 = vmatpush1.bf16.msra.mxu0 0
        %1511 = vmatprep.subr.bf16.mxu0 0
        %1512 = vmatpush1.bf16.msra.mxu0 0
        %1513 = vmatprep.subr.bf16.mxu0 0
        %1514 = vmatpush1.bf16.msra.mxu0 0
        %1515 = vmatprep.mubr.bf16.mxu0 0
        %1516 = vmatmul.mubr.bf16.gmra.mrb[0].mxu0 %v1481
        %v1517 = vpop.f32.mrb[0].mxu0
        %v1518 = vadd.f32 %v1466, %v1517
        %v1519 = vpop.f32.mrb[0].mxu0
        %v1520 = vpop.f32.mrb[0].mxu0
        %v1521 = vpop.f32.mrb[0].mxu0
        %1522 = vdwg.mxu0
        %v1523 = vmul.f32 %v1518, %v1518
        %v1524 = vmul.f32 %v1518, %v1523
        %v1525 = vmul.f32 %v1524, 0.044715
        %v1526 = vadd.f32 %v1518, %v1525
        %v1527 = vmul.f32 %v1526, 0.7978846
        %v1528 = vtanh.pop %v1527
        %v1529 = vadd.f32 %v1528, 1.0
        %v1530 = vmul.f32 %v1529, 0.5
        %v1531 = vmul.f32 %v1518, %v1530
        %v1532 = vpack.c.bf16 %v1531, %v1531
        %v1533 = vld [vmem:[%s9] sm:$0xf]
        %v1534 = vld [vmem:[%s9 + $0x4] sm:$0xf]
        %v1535 = vld [vmem:[%s9 + $0x8] sm:$0xf]
        %v1536 = vld [vmem:[%s9 + $0xc] sm:$0xf]
        %v1537 = vld [vmem:[%s9 + $0x10] sm:$0xf]
        %v1538 = vld [vmem:[%s9 + $0x14] sm:$0xf]
        %v1539 = vld [vmem:[%s9 + $0x18] sm:$0xf]
        %v1540 = vld [vmem:[%s9 + $0x1c] sm:$0xf]
        %v1541 = vld [vmem:[%s12 + $0x3] sm:$0x1]
        %v1542 = vlaneseq
        %v1543 = vshrl.u32 %v1542, 7
        %v1544 = vsub.s32 0, %v1543
        %v1545 = vrot.slane %v1541, %v1544
        %v1554 = vunpack.c.l.b16 %v1533
        %v1555 = vunpack.c.l.b16 %v1534
        %v1556 = vunpack.c.l.b16 %v1535
        %v1557 = vunpack.c.l.b16 %v1536
        %v1558 = vunpack.c.l.b16 %v1537
        %v1559 = vunpack.c.l.b16 %v1538
        %v1560 = vunpack.c.l.b16 %v1539
        %v1561 = vunpack.c.l.b16 %v1540
        %v1562 = vpack.c.b16 %v1555, %v1554
        %v1563 = vpack.c.b16 %v1557, %v1556
        %v1564 = vpack.c.b16 %v1559, %v1558
        %v1565 = vpack.c.b16 %v1561, %v1560
        %vm1570 = vcmask 523264
        %v1572 = vsel %vm1570, %v1532, 0
        %1574 = vmatprep.subr.bf16.mxu0 0
        %1575 = vmatpush1.bf16.msra.mxu0 %v1562
        %1576 = vmatprep.subr.bf16.mxu0 0
        %1577 = vmatpush1.bf16.msra.mxu0 %v1563
        %1578 = vmatprep.subr.bf16.mxu0 0
        %1579 = vmatpush1.bf16.msra.mxu0 %v1564
        %1580 = vmatprep.subr.bf16.mxu0 0
        %1581 = vmatpush1.bf16.msra.mxu0 %v1565
        %1582 = vmatprep.subr.bf16.mxu0 0
        %1583 = vmatpush1.bf16.msra.mxu0 0
        %1584 = vmatprep.subr.bf16.mxu0 0
        %1585 = vmatpush1.bf16.msra.mxu0 0
        %1586 = vmatprep.subr.bf16.mxu0 0
        %1587 = vmatpush1.bf16.msra.mxu0 0
        %1588 = vmatprep.subr.bf16.mxu0 0
        %1589 = vmatpush1.bf16.msra.mxu0 0
        %1590 = vmatprep.subr.bf16.mxu0 0
        %1591 = vmatpush1.bf16.msra.mxu0 0
        %1592 = vmatprep.subr.bf16.mxu0 0
        %1593 = vmatpush1.bf16.msra.mxu0 0
        %1594 = vmatprep.subr.bf16.mxu0 0
        %1595 = vmatpush1.bf16.msra.mxu0 0
        %1596 = vmatprep.subr.bf16.mxu0 0
        %1597 = vmatpush1.bf16.msra.mxu0 0
        %1598 = vmatprep.subr.bf16.mxu0 0
        %1599 = vmatpush1.bf16.msra.mxu0 0
        %1600 = vmatprep.subr.bf16.mxu0 0
        %1601 = vmatpush1.bf16.msra.mxu0 0
        %1602 = vmatprep.subr.bf16.mxu0 0
        %1603 = vmatpush1.bf16.msra.mxu0 0
        %1604 = vmatprep.subr.bf16.mxu0 0
        %1605 = vmatpush1.bf16.msra.mxu0 0
        %1606 = vmatprep.mubr.bf16.mxu0 0
        %1607 = vmatmul.mubr.bf16.gmra.mrb[0].mxu0 %v1572
        %v1608 = vpop.f32.mrb[0].mxu0
        %v1609 = vadd.f32 %v1545, %v1608
        %v1610 = vpop.f32.mrb[0].mxu0
        %v1611 = vpop.f32.mrb[0].mxu0
        %v1612 = vpop.f32.mrb[0].mxu0
        %1613 = vdwg.mxu0
        %v1614 = vadd.f32 %v1455, %v1609
        %v1615 = vld [vmem:[%s12 + $0x4] sm:$0x1]
        %v1616 = vld [vmem:[%s12 + $0x5] sm:$0x1]
        %v1617 = vsel %vm1431, %v1614, 0.0
        %1618 = vadd.xlane.f32.xlu0 %v1617
        %v1619 = vpop.xlane.xlu0 %1618
        %v1620 = vmul.f32 %v1619, %v1435
        %v1621 = vsub.f32 %v1614, %v1620
        %v1622 = vmul.f32 %v1621, %v1621
        %v1623 = vsel %vm1431, %v1622, 0.0
        %1624 = vadd.xlane.f32.xlu0 %v1623
        %v1625 = vpop.xlane.xlu0 %1624
        %v1626 = vmul.f32 %v1625, %v1435
        %v1627 = vadd.f32 %v1626, 1e-05
        %v1628 = vrsqrt.pop %v1627
        %v1629 = vmul.f32 %v1621, %v1628
        %v1630 = vlaneseq
        %v1631 = vshrl.u32 %v1630, 7
        %v1632 = vsub.s32 0, %v1631
        %v1633 = vrot.slane %v1615, %v1632
        %v1634 = vmul.f32 %v1629, %v1633
        %v1635 = vlaneseq
        %v1636 = vshrl.u32 %v1635, 7
        %v1637 = vsub.s32 0, %v1636
        %v1638 = vrot.slane %v1616, %v1637
        %v1639 = vadd.f32 %v1634, %v1638
        %1640 = vst.msk [vmem:[%s433] sm:$0xf] %vm1431, %v1639
        %s1641 = sand.u32 %s313, 1
        %s1642 = scalar_lea.sflag [#allocation5], %s1641
        %s1643 = sand.u32 %s313, 1
        %s1644 = smul.addr %s1643, 4
        %s1645 = scalar_lea.vmem [#allocation4], %s1644
        // Predicated region
        $region73: #{transformer_encoder_forward.1} parent=71 // pred_check
          %p1646 = pneg %p323
        $region74: #{transformer_encoder_forward.1} parent=71 // pred_check_branch
          %1648 = sbr.rel (%p1646) target = $region76
        $region75: #{transformer_encoder_forward.1} parent=71 // pred_region
          %s1650 = ssub.s32 64, 64
          %1651 = vsyncadd %s1642, %s1650
          %s1652 = smul.addr %s27, 64
          %s1653 = scalar_lea.hbm %s13, %s1652
          %s1655 = sshll.u32 %s1645, 4
          %s1656 = int_to_ptr.vmem [resolvable:$true] %s1655
          %1658 = dma.vmem_to_hbm [thread:$0]  %s1656, 64, %s1653, %s1642
        $region76: #{transformer_encoder_forward.1} parent=71 // pred_fallthru
          _
      $region72: #{transformer_encoder_forward.1} parent=5 // pred_fallthru
        _
      %p1659 = scmp.le.s32.totalorder 2, %s22
      // Predicated region
      $region77: #{transformer_encoder_forward.1} parent=5 // pred_check
        %p1660 = pneg %p1659
      $region78: #{transformer_encoder_forward.1} parent=5 // pred_check_branch
        %1662 = sbr.rel (%p1660) target = $region80
      $region79: #{transformer_encoder_forward.1} parent=5 // pred_region
        %s1663 = ssub.s32 %s22, 2
        // Predicated region
        $region81: #{transformer_encoder_forward.1} parent=79 // pred_check
          %p1664 = pneg %p329
        $region82: #{transformer_encoder_forward.1} parent=79 // pred_check_branch
          %1666 = sbr.rel (%p1664) target = $region84
        $region83: #{transformer_encoder_forward.1} parent=79 // pred_region
          %s1667 = sand.u32 %s314, 1
          %s1668 = scalar_lea.sflag [#allocation5], %s1667
          %s1669 = sand.u32 %s314, 1
          %s1670 = smul.addr %s1669, 4
          %s1671 = scalar_lea.vmem [#allocation4], %s1670
          %1672 = dma.done %s1668, 64
        $region84: #{transformer_encoder_forward.1} parent=79 // pred_fallthru
          _
      $region80: #{transformer_encoder_forward.1} parent=5 // pred_fallthru
        _
    $region6: #{transformer_encoder_forward.1} parent=1 // loop_footer
      %s26 = sadd.s32 1, %s22
    $region7: #{transformer_encoder_forward.1} parent=1 // loop_footer_branch
      %21 = sbr.rel target = $region3
    $region8: #{transformer_encoder_forward.1} parent=1 // loop_exit
      _
    %1673 = vsyncpa [#allocation5], 1
    %s1674 = scalar_lea.sflag [#allocation5], 1
    %1675 = vsyncpa %s1674, 1

</llo_original>
